<compile_context>
chip_gen: v7x
topology: tpu7x:2x2x1
jax: 0.10.0
libtpu: 0.0.40
codegen_flags: <defaults>
</compile_context>

<pallas_src>
import functools

import jax
import jax.numpy as jnp
from jax.experimental import pallas as pl
from jax.experimental.pallas import tpu as pltpu

EMB_DIM = 50   # nn.GRU(50, hidden_size) => embedding dim is 50
LANE = 128
SUBLANE = 8


def _round_up(x, m):
    return (x + m - 1) // m * m


# ----------------------------- Pallas kernel --------------------------------
def _gru_decoder_kernel(x_ref, h0_ref, wih_ref, whh_ref, bih_ref, bhh_ref,
                        wout_ref, bout_ref,
                        logp_ref, hfin_ref,
                        gi_ref, hs_ref,
                        *, hp, seq_len):
    """Single-launch GRU decode: phase0 input-proj, serial recurrence, phase2 output-proj."""
    # ---- Phase 0: input projection for ALL steps in one wide MXU matmul ----
    gi_ref[...] = (jnp.dot(x_ref[...], wih_ref[...],
                           preferred_element_type=jnp.float32) + bih_ref[...])
    # Zero the hidden-state slab so padded rows (t >= seq_len) stay finite.
    hs_ref[...] = jnp.zeros_like(hs_ref)

    # ---- Phase 1: serial recurrence (only h @ W_hh on the critical path) ----
    def step(t, h):
        gi = gi_ref[pl.ds(t, 1), :]                                   # (1, 3*HP)
        gh = (jnp.dot(h, whh_ref[...], preferred_element_type=jnp.float32)
              + bhh_ref[...])                                          # (1, 3*HP)
        r = jax.nn.sigmoid(gi[:, 0:hp] + gh[:, 0:hp])
        z = jax.nn.sigmoid(gi[:, hp:2 * hp] + gh[:, hp:2 * hp])
        n = jnp.tanh(gi[:, 2 * hp:3 * hp] + r * gh[:, 2 * hp:3 * hp])
        h_new = (1.0 - z) * n + z * h            # padded lanes stay exactly 0
        hs_ref[pl.ds(t, 1), :] = h_new
        return h_new

    h_final = jax.lax.fori_loop(0, seq_len, step, h0_ref[...], unroll=True)
    hfin_ref[...] = h_final                       # written exactly once

    # ---- Phase 2: batched output projection + LogSoftmax(dim=1) -------------
    # Padded output lanes carry -1e30 via the pre-poisoned bias -> no mask needed.
    logits = (jnp.dot(hs_ref[...], wout_ref[...],
                      preferred_element_type=jnp.float32) + bout_ref[...])
    m = jnp.max(logits, axis=-1, keepdims=True)
    shifted = logits - m
    lse = jnp.log(jnp.sum(jnp.exp(shifted), axis=-1, keepdims=True))
    logp_ref[...] = shifted - lse                 # single lane-dense writeback


# --------------------- One-time parameter packing (hoisted) ------------------
def prepare_params(params, dtype=jnp.float32):
    """Pack/pad PyTorch-layout GRU+Linear params for the kernel. Done once.

    dtype=jnp.bfloat16 stores the matmul weights in bf16 (halves weight DMA on
    v6e/v7x); accumulation stays f32 via preferred_element_type. Biases stay f32.
    """
    H = params["w_hh"].shape[1]
    O = params["w_out"].shape[0]
    E = params["embedding"].shape[1]
    HP = _round_up(H, LANE)
    OP = _round_up(O, LANE)
    EP = _round_up(E, LANE)
    GP = 3 * HP

    emb = jnp.zeros((params["embedding"].shape[0], EP), jnp.float32)
    emb = emb.at[:, :E].set(params["embedding"].astype(jnp.float32))

    # (3H, E) -> (3, E, H) -> zero-pad -> (EP, 3*HP); gate g in cols [g*HP:(g+1)*HP]
    wih = params["w_ih"].reshape(3, H, E).transpose(0, 2, 1)
    wih_p = jnp.zeros((3, EP, HP), dtype).at[:, :E, :H].set(wih.astype(dtype))
    wih_packed = wih_p.transpose(1, 0, 2).reshape(EP, GP)

    whh = params["w_hh"].reshape(3, H, H).transpose(0, 2, 1)
    whh_p = jnp.zeros((3, HP, HP), dtype).at[:, :H, :H].set(whh.astype(dtype))
    whh_packed = whh_p.transpose(1, 0, 2).reshape(HP, GP)

    bih = jnp.zeros((3, HP), jnp.float32).at[:, :H].set(
        params["b_ih"].reshape(3, H)).reshape(1, GP)
    bhh = jnp.zeros((3, HP), jnp.float32).at[:, :H].set(
        params["b_hh"].reshape(3, H)).reshape(1, GP)

    wout = jnp.zeros((HP, OP), dtype).at[:H, :O].set(params["w_out"].T.astype(dtype))
    # Poison padded output lanes so log-softmax needs no per-step mask.
    bout = jnp.full((1, OP), jnp.float32(-1e30), jnp.float32).at[:, :O].set(params["b_out"])

    return {"emb": emb, "w_ih": wih_packed, "w_hh": whh_packed,
            "b_ih": bih, "b_hh": bhh, "w_out": wout, "b_out": bout,
            "H": H, "O": O, "HP": HP, "OP": OP, "EP": EP}


# ------------------------------ Python wrappers -------------------------------
def decoder_rnn_decode(prepped, token_ids, hidden):
    """Run all T teacher-forced decode steps in a single pallas_call.

    Returns (log_probs (T, O), final_hidden (1, 1, H)). Each step is exactly
    DecoderRNN.forward(token_ids[t], hidden_t).
    """
    H, O = prepped["H"], prepped["O"]
    HP, OP, EP = prepped["HP"], prepped["OP"], prepped["EP"]
    GP = 3 * HP
    T = int(token_ids.shape[0])
    TP = _round_up(T, SUBLANE)

    # Embedding lookup is a pure gather -> hoisted to the wrapper (one XLA op);
    # everything else (input proj, recurrence, output proj, softmax) is in-kernel.
    x = prepped["emb"][jnp.asarray(token_ids, jnp.int32)]            # (T, EP)
    x_pad = jnp.zeros((TP, EP), jnp.float32).at[:T, :].set(x)

    h0 = jnp.zeros((1, HP), jnp.float32).at[:, :H].set(
        hidden.reshape(1, H).astype(jnp.float32))

    kernel = functools.partial(_gru_decoder_kernel, hp=HP, seq_len=T)
    vmem = lambda: pl.BlockSpec(memory_space=pltpu.MemorySpace.VMEM)

    logp_pad, h_pad = pl.pallas_call(
        kernel,
        out_shape=(
            jax.ShapeDtypeStruct((TP, OP), jnp.float32),   # log-probs slab
            jax.ShapeDtypeStruct((1, HP), jnp.float32),    # final hidden
        ),
        in_specs=[vmem() for _ in range(8)],
        out_specs=(vmem(), vmem()),
        scratch_shapes=[
            pltpu.VMEM((TP, GP), jnp.float32),   # gi_all (input-proj results)
            pltpu.VMEM((TP, HP), jnp.float32),   # per-step hidden states
        ],
    )(x_pad, h0, prepped["w_ih"], prepped["w_hh"], prepped["b_ih"],
      prepped["b_hh"], prepped["w_out"], prepped["b_out"])

    return logp_pad[:T, :O], h_pad[:, :H].reshape(1, 1, H)


def decoder_rnn_forward(prepped, input_idx, hidden):
    """Exact equivalent of DecoderRNN.forward(input_, hidden) for one token."""
    ids = jnp.asarray(input_idx, jnp.int32).reshape(1)
    logp, h_new = decoder_rnn_decode(prepped, ids, hidden)
    return logp, h_new


# ------------------------- Pure-JAX reference (check) ------------------------
def decoder_rnn_reference(params, input_idx, hidden):
    x = params["embedding"][input_idx].reshape(1, EMB_DIM)
    h = hidden.reshape(1, -1)
    H = h.shape[-1]
    gi = x @ params["w_ih"].T + params["b_ih"]
    gh = h @ params["w_hh"].T + params["b_hh"]
    i_r, i_z, i_n = gi[:, :H], gi[:, H:2 * H], gi[:, 2 * H:]
    h_r, h_z, h_n = gh[:, :H], gh[:, H:2 * H], gh[:, 2 * H:]
    r = jax.nn.sigmoid(i_r + h_r)
    z = jax.nn.sigmoid(i_z + h_z)
    n = jnp.tanh(i_n + r * h_n)
    h_new = (1.0 - z) * n + z * h
    logits = h_new @ params["w_out"].T + params["b_out"]
    return jax.nn.log_softmax(logits, axis=1), h_new.reshape(1, 1, H)


# --------------------------------- Params ------------------------------------
def init_params(key, vocab_size, hidden_size, output_size):
    ks = jax.random.split(key, 7)
    bound = 1.0 / jnp.sqrt(jnp.float32(hidden_size))
    u = lambda k, shape: jax.random.uniform(k, shape, jnp.float32, -bound, bound)
    return {
        "embedding": jax.random.normal(ks[0], (vocab_size, EMB_DIM), jnp.float32),
        "w_ih": u(ks[1], (3 * hidden_size, EMB_DIM)),
        "w_hh": u(ks[2], (3 * hidden_size, hidden_size)),
        "b_ih": u(ks[3], (3 * hidden_size,)),
        "b_hh": u(ks[4], (3 * hidden_size,)),
        "w_out": u(ks[5], (output_size, hidden_size)),
        "b_out": u(ks[6], (output_size,)),
    }


# ---------------------------------- Main --------------------------------------
if __name__ == "__main__":
    VOCAB, HIDDEN, OUTPUT, T = 16, 32, 64, 8

    key = jax.random.PRNGKey(0)
    pkey, hkey, tkey = jax.random.split(key, 3)
    params = init_params(pkey, VOCAB, HIDDEN, OUTPUT)
    prepped = prepare_params(params)                       # one-time packing

    hidden = jax.random.normal(hkey, (1, 1, HIDDEN), jnp.float32)
    token_ids = jax.random.randint(tkey, (T,), 0, VOCAB, jnp.int32)

    # Whole decode sequence: one kernel launch.
    logp_seq, h_final = decoder_rnn_decode(prepped, token_ids, hidden)
    logp_seq, h_final = jax.block_until_ready((logp_seq, h_final))

    # Reference: iterate the single-step pure-JAX model.
    logp_ref_rows = []
    h_ref = hidden
    for t in range(T):
        lp, h_ref = decoder_rnn_reference(params, token_ids[t], h_ref)
        logp_ref_rows.append(lp[0])
    logp_ref = jnp.stack(logp_ref_rows)

    assert logp_seq.shape == (T, OUTPUT) and h_final.shape == (1, 1, HIDDEN)
    assert jnp.allclose(logp_seq, logp_ref, atol=1e-4, rtol=1e-4)
    assert jnp.allclose(h_final, h_ref, atol=1e-4, rtol=1e-4)
    assert jnp.allclose(jnp.sum(jnp.exp(logp_seq), axis=1), 1.0, atol=1e-5)

    # Single-step parity with the original DecoderRNN.forward signature.
    logp1, h1 = decoder_rnn_forward(prepped, token_ids[0], hidden)
    logp1, h1 = jax.block_until_ready((logp1, h1))
    lp_ref1, h_ref1 = decoder_rnn_reference(params, token_ids[0], hidden)
    assert logp1.shape == (1, OUTPUT) and h1.shape == (1, 1, HIDDEN)
    assert jnp.allclose(logp1, lp_ref1, atol=1e-4, rtol=1e-4)
    assert jnp.allclose(h1, h_ref1, atol=1e-4, rtol=1e-4)

    print("KERNEL_OK")
</pallas_src>

<mosaic_0001>
module attributes {stable_mosaic.version = 11 : i64} {
  func.func @_gru_decoder_kernel(%arg0: memref<8x128xf32, #tpu.memory_space<vmem>>, %arg1: memref<1x128xf32, #tpu.memory_space<vmem>>, %arg2: memref<128x384xf32, #tpu.memory_space<vmem>>, %arg3: memref<128x384xf32, #tpu.memory_space<vmem>>, %arg4: memref<1x384xf32, #tpu.memory_space<vmem>>, %arg5: memref<1x384xf32, #tpu.memory_space<vmem>>, %arg6: memref<128x128xf32, #tpu.memory_space<vmem>>, %arg7: memref<1x128xf32, #tpu.memory_space<vmem>>, %arg8: memref<8x128xf32, #tpu.memory_space<vmem>>, %arg9: memref<1x128xf32, #tpu.memory_space<vmem>>, %arg10: memref<8x384xf32, #tpu.memory_space<vmem>>, %arg11: memref<8x128xf32, #tpu.memory_space<vmem>>) attributes {dimension_semantics = [], scalar_prefetch = 0 : i64, scratch_operands = 2 : i64, tpu.core_type = #tpu.core_type<tc>} {
    %c0 = arith.constant 0 : index
    %c0_0 = arith.constant 0 : index
    %0 = vector.load %arg0[%c0, %c0_0] : memref<8x128xf32, #tpu.memory_space<vmem>>, vector<8x128xf32>
    %c0_1 = arith.constant 0 : index
    %c0_2 = arith.constant 0 : index
    %1 = vector.load %arg2[%c0_1, %c0_2] : memref<128x384xf32, #tpu.memory_space<vmem>>, vector<128x384xf32>
    %cst = arith.constant dense<0.000000e+00> : vector<8x384xf32>
    %2 = tpu.matmul %0, %1, %cst {dimension_numbers = #tpu.dot_dimension_numbers<[1], [0], [0], [1], [0, 0, 1, 1], [], []>} : vector<8x128xf32>, vector<128x384xf32>, vector<8x384xf32> -> vector<8x384xf32>
    %c0_3 = arith.constant 0 : index
    %c0_4 = arith.constant 0 : index
    %3 = vector.load %arg4[%c0_3, %c0_4] : memref<1x384xf32, #tpu.memory_space<vmem>>, vector<1x384xf32>
    %4 = vector.broadcast %3 : vector<1x384xf32> to vector<8x384xf32>
    %5 = arith.addf %2, %4 : vector<8x384xf32>
    %c0_5 = arith.constant 0 : index
    %c0_6 = arith.constant 0 : index
    %6 = vector.load %arg10[%c0_5, %c0_6] : memref<8x384xf32, #tpu.memory_space<vmem>>, vector<8x384xf32>
    tpu.vector_store %arg10[%c0_5, %c0_6], %5 {strides = array<i32>} : memref<8x384xf32, #tpu.memory_space<vmem>>, vector<8x384xf32>,
    %cst_7 = arith.constant 0.000000e+00 : f32
    %7 = vector.broadcast %cst_7 : f32 to vector<8x128xf32>
    %c0_8 = arith.constant 0 : index
    %c0_9 = arith.constant 0 : index
    %8 = vector.load %arg11[%c0_8, %c0_9] : memref<8x128xf32, #tpu.memory_space<vmem>>, vector<8x128xf32>
    tpu.vector_store %arg11[%c0_8, %c0_9], %7 {strides = array<i32>} : memref<8x128xf32, #tpu.memory_space<vmem>>, vector<8x128xf32>,
    %c0_10 = arith.constant 0 : index
    %c0_11 = arith.constant 0 : index
    %9 = vector.load %arg1[%c0_10, %c0_11] : memref<1x128xf32, #tpu.memory_space<vmem>>, vector<1x128xf32>
    %c0_i32 = arith.constant 0 : i32
    %10 = arith.index_cast %c0_i32 : i32 to index
    %c0_12 = arith.constant 0 : index
    %11 = vector.load %arg10[%10, %c0_12] : memref<8x384xf32, #tpu.memory_space<vmem>>, vector<1x384xf32>
    %c0_13 = arith.constant 0 : index
    %c0_14 = arith.constant 0 : index
    %12 = vector.load %arg3[%c0_13, %c0_14] : memref<128x384xf32, #tpu.memory_space<vmem>>, vector<128x384xf32>
    %cst_15 = arith.constant dense<0.000000e+00> : vector<1x384xf32>
    %13 = tpu.matmul %9, %12, %cst_15 {dimension_numbers = #tpu.dot_dimension_numbers<[1], [0], [0], [1], [0, 0, 1, 1], [], []>} : vector<1x128xf32>, vector<128x384xf32>, vector<1x384xf32> -> vector<1x384xf32>
    %c0_16 = arith.constant 0 : index
    %c0_17 = arith.constant 0 : index
    %14 = vector.load %arg5[%c0_16, %c0_17] : memref<1x384xf32, #tpu.memory_space<vmem>>, vector<1x384xf32>
    %15 = arith.addf %13, %14 : vector<1x384xf32>
    %16 = vector.extract_strided_slice %11 {offsets = [0, 0], sizes = [1, 128], strides = [1, 1]} : vector<1x384xf32> to vector<1x128xf32>
    %17 = vector.extract_strided_slice %15 {offsets = [0, 0], sizes = [1, 128], strides = [1, 1]} : vector<1x384xf32> to vector<1x128xf32>
    %18 = arith.addf %16, %17 : vector<1x128xf32>
    %19 = arith.negf %18 : vector<1x128xf32>
    %20 = math.exp %19 : vector<1x128xf32>
    %cst_18 = arith.constant 1.000000e+00 : f32
    %21 = vector.broadcast %cst_18 : f32 to vector<1x128xf32>
    %22 = arith.addf %21, %20 : vector<1x128xf32>
    %23 = arith.divf %21, %22 : vector<1x128xf32>
    %24 = vector.extract_strided_slice %11 {offsets = [0, 128], sizes = [1, 128], strides = [1, 1]} : vector<1x384xf32> to vector<1x128xf32>
    %25 = vector.extract_strided_slice %15 {offsets = [0, 128], sizes = [1, 128], strides = [1, 1]} : vector<1x384xf32> to vector<1x128xf32>
    %26 = arith.addf %24, %25 : vector<1x128xf32>
    %27 = arith.negf %26 : vector<1x128xf32>
    %28 = math.exp %27 : vector<1x128xf32>
    %cst_19 = arith.constant 1.000000e+00 : f32
    %29 = vector.broadcast %cst_19 : f32 to vector<1x128xf32>
    %30 = arith.addf %29, %28 : vector<1x128xf32>
    %31 = arith.divf %29, %30 : vector<1x128xf32>
    %32 = vector.extract_strided_slice %11 {offsets = [0, 256], sizes = [1, 128], strides = [1, 1]} : vector<1x384xf32> to vector<1x128xf32>
    %33 = vector.extract_strided_slice %15 {offsets = [0, 256], sizes = [1, 128], strides = [1, 1]} : vector<1x384xf32> to vector<1x128xf32>
    %34 = arith.mulf %23, %33 : vector<1x128xf32>
    %35 = arith.addf %32, %34 : vector<1x128xf32>
    %36 = math.tanh %35 : vector<1x128xf32>
    %cst_20 = arith.constant 1.000000e+00 : f32
    %37 = vector.broadcast %cst_20 : f32 to vector<1x128xf32>
    %38 = arith.subf %37, %31 : vector<1x128xf32>
    %39 = arith.mulf %38, %36 : vector<1x128xf32>
    %40 = arith.mulf %31, %9 : vector<1x128xf32>
    %41 = arith.addf %39, %40 : vector<1x128xf32>
    %42 = arith.index_cast %c0_i32 : i32 to index
    %c0_21 = arith.constant 0 : index
    %43 = vector.load %arg11[%42, %c0_21] : memref<8x128xf32, #tpu.memory_space<vmem>>, vector<1x128xf32>
    tpu.vector_store %arg11[%42, %c0_21], %41 {strides = array<i32>} : memref<8x128xf32, #tpu.memory_space<vmem>>, vector<1x128xf32>,
    %c1_i32 = arith.constant 1 : i32
    %44 = arith.index_cast %c1_i32 : i32 to index
    %c0_22 = arith.constant 0 : index
    %45 = vector.load %arg10[%44, %c0_22] : memref<8x384xf32, #tpu.memory_space<vmem>>, vector<1x384xf32>
    %c0_23 = arith.constant 0 : index
    %c0_24 = arith.constant 0 : index
    %46 = vector.load %arg3[%c0_23, %c0_24] : memref<128x384xf32, #tpu.memory_space<vmem>>, vector<128x384xf32>
    %cst_25 = arith.constant dense<0.000000e+00> : vector<1x384xf32>
    %47 = tpu.matmul %41, %46, %cst_25 {dimension_numbers = #tpu.dot_dimension_numbers<[1], [0], [0], [1], [0, 0, 1, 1], [], []>} : vector<1x128xf32>, vector<128x384xf32>, vector<1x384xf32> -> vector<1x384xf32>
    %c0_26 = arith.constant 0 : index
    %c0_27 = arith.constant 0 : index
    %48 = vector.load %arg5[%c0_26, %c0_27] : memref<1x384xf32, #tpu.memory_space<vmem>>, vector<1x384xf32>
    %49 = arith.addf %47, %48 : vector<1x384xf32>
    %50 = vector.extract_strided_slice %45 {offsets = [0, 0], sizes = [1, 128], strides = [1, 1]} : vector<1x384xf32> to vector<1x128xf32>
    %51 = vector.extract_strided_slice %49 {offsets = [0, 0], sizes = [1, 128], strides = [1, 1]} : vector<1x384xf32> to vector<1x128xf32>
    %52 = arith.addf %50, %51 : vector<1x128xf32>
    %53 = arith.negf %52 : vector<1x128xf32>
    %54 = math.exp %53 : vector<1x128xf32>
    %cst_28 = arith.constant 1.000000e+00 : f32
    %55 = vector.broadcast %cst_28 : f32 to vector<1x128xf32>
    %56 = arith.addf %55, %54 : vector<1x128xf32>
    %57 = arith.divf %55, %56 : vector<1x128xf32>
    %58 = vector.extract_strided_slice %45 {offsets = [0, 128], sizes = [1, 128], strides = [1, 1]} : vector<1x384xf32> to vector<1x128xf32>
    %59 = vector.extract_strided_slice %49 {offsets = [0, 128], sizes = [1, 128], strides = [1, 1]} : vector<1x384xf32> to vector<1x128xf32>
    %60 = arith.addf %58, %59 : vector<1x128xf32>
    %61 = arith.negf %60 : vector<1x128xf32>
    %62 = math.exp %61 : vector<1x128xf32>
    %cst_29 = arith.constant 1.000000e+00 : f32
    %63 = vector.broadcast %cst_29 : f32 to vector<1x128xf32>
    %64 = arith.addf %63, %62 : vector<1x128xf32>
    %65 = arith.divf %63, %64 : vector<1x128xf32>
    %66 = vector.extract_strided_slice %45 {offsets = [0, 256], sizes = [1, 128], strides = [1, 1]} : vector<1x384xf32> to vector<1x128xf32>
    %67 = vector.extract_strided_slice %49 {offsets = [0, 256], sizes = [1, 128], strides = [1, 1]} : vector<1x384xf32> to vector<1x128xf32>
    %68 = arith.mulf %57, %67 : vector<1x128xf32>
    %69 = arith.addf %66, %68 : vector<1x128xf32>
    %70 = math.tanh %69 : vector<1x128xf32>
    %cst_30 = arith.constant 1.000000e+00 : f32
    %71 = vector.broadcast %cst_30 : f32 to vector<1x128xf32>
    %72 = arith.subf %71, %65 : vector<1x128xf32>
    %73 = arith.mulf %72, %70 : vector<1x128xf32>
    %74 = arith.mulf %65, %41 : vector<1x128xf32>
    %75 = arith.addf %73, %74 : vector<1x128xf32>
    %76 = arith.index_cast %c1_i32 : i32 to index
    %c0_31 = arith.constant 0 : index
    %77 = vector.load %arg11[%76, %c0_31] : memref<8x128xf32, #tpu.memory_space<vmem>>, vector<1x128xf32>
    tpu.vector_store %arg11[%76, %c0_31], %75 {strides = array<i32>} : memref<8x128xf32, #tpu.memory_space<vmem>>, vector<1x128xf32>,
    %c2_i32 = arith.constant 2 : i32
    %78 = arith.index_cast %c2_i32 : i32 to index
    %c0_32 = arith.constant 0 : index
    %79 = vector.load %arg10[%78, %c0_32] : memref<8x384xf32, #tpu.memory_space<vmem>>, vector<1x384xf32>
    %c0_33 = arith.constant 0 : index
    %c0_34 = arith.constant 0 : index
    %80 = vector.load %arg3[%c0_33, %c0_34] : memref<128x384xf32, #tpu.memory_space<vmem>>, vector<128x384xf32>
    %cst_35 = arith.constant dense<0.000000e+00> : vector<1x384xf32>
    %81 = tpu.matmul %75, %80, %cst_35 {dimension_numbers = #tpu.dot_dimension_numbers<[1], [0], [0], [1], [0, 0, 1, 1], [], []>} : vector<1x128xf32>, vector<128x384xf32>, vector<1x384xf32> -> vector<1x384xf32>
    %c0_36 = arith.constant 0 : index
    %c0_37 = arith.constant 0 : index
    %82 = vector.load %arg5[%c0_36, %c0_37] : memref<1x384xf32, #tpu.memory_space<vmem>>, vector<1x384xf32>
    %83 = arith.addf %81, %82 : vector<1x384xf32>
    %84 = vector.extract_strided_slice %79 {offsets = [0, 0], sizes = [1, 128], strides = [1, 1]} : vector<1x384xf32> to vector<1x128xf32>
    %85 = vector.extract_strided_slice %83 {offsets = [0, 0], sizes = [1, 128], strides = [1, 1]} : vector<1x384xf32> to vector<1x128xf32>
    %86 = arith.addf %84, %85 : vector<1x128xf32>
    %87 = arith.negf %86 : vector<1x128xf32>
    %88 = math.exp %87 : vector<1x128xf32>
    %cst_38 = arith.constant 1.000000e+00 : f32
    %89 = vector.broadcast %cst_38 : f32 to vector<1x128xf32>
    %90 = arith.addf %89, %88 : vector<1x128xf32>
    %91 = arith.divf %89, %90 : vector<1x128xf32>
    %92 = vector.extract_strided_slice %79 {offsets = [0, 128], sizes = [1, 128], strides = [1, 1]} : vector<1x384xf32> to vector<1x128xf32>
    %93 = vector.extract_strided_slice %83 {offsets = [0, 128], sizes = [1, 128], strides = [1, 1]} : vector<1x384xf32> to vector<1x128xf32>
    %94 = arith.addf %92, %93 : vector<1x128xf32>
    %95 = arith.negf %94 : vector<1x128xf32>
    %96 = math.exp %95 : vector<1x128xf32>
    %cst_39 = arith.constant 1.000000e+00 : f32
    %97 = vector.broadcast %cst_39 : f32 to vector<1x128xf32>
    %98 = arith.addf %97, %96 : vector<1x128xf32>
    %99 = arith.divf %97, %98 : vector<1x128xf32>
    %100 = vector.extract_strided_slice %79 {offsets = [0, 256], sizes = [1, 128], strides = [1, 1]} : vector<1x384xf32> to vector<1x128xf32>
    %101 = vector.extract_strided_slice %83 {offsets = [0, 256], sizes = [1, 128], strides = [1, 1]} : vector<1x384xf32> to vector<1x128xf32>
    %102 = arith.mulf %91, %101 : vector<1x128xf32>
    %103 = arith.addf %100, %102 : vector<1x128xf32>
    %104 = math.tanh %103 : vector<1x128xf32>
    %cst_40 = arith.constant 1.000000e+00 : f32
    %105 = vector.broadcast %cst_40 : f32 to vector<1x128xf32>
    %106 = arith.subf %105, %99 : vector<1x128xf32>
    %107 = arith.mulf %106, %104 : vector<1x128xf32>
    %108 = arith.mulf %99, %75 : vector<1x128xf32>
    %109 = arith.addf %107, %108 : vector<1x128xf32>
    %110 = arith.index_cast %c2_i32 : i32 to index
    %c0_41 = arith.constant 0 : index
    %111 = vector.load %arg11[%110, %c0_41] : memref<8x128xf32, #tpu.memory_space<vmem>>, vector<1x128xf32>
    tpu.vector_store %arg11[%110, %c0_41], %109 {strides = array<i32>} : memref<8x128xf32, #tpu.memory_space<vmem>>, vector<1x128xf32>,
    %c3_i32 = arith.constant 3 : i32
    %112 = arith.index_cast %c3_i32 : i32 to index
    %c0_42 = arith.constant 0 : index
    %113 = vector.load %arg10[%112, %c0_42] : memref<8x384xf32, #tpu.memory_space<vmem>>, vector<1x384xf32>
    %c0_43 = arith.constant 0 : index
    %c0_44 = arith.constant 0 : index
    %114 = vector.load %arg3[%c0_43, %c0_44] : memref<128x384xf32, #tpu.memory_space<vmem>>, vector<128x384xf32>
    %cst_45 = arith.constant dense<0.000000e+00> : vector<1x384xf32>
    %115 = tpu.matmul %109, %114, %cst_45 {dimension_numbers = #tpu.dot_dimension_numbers<[1], [0], [0], [1], [0, 0, 1, 1], [], []>} : vector<1x128xf32>, vector<128x384xf32>, vector<1x384xf32> -> vector<1x384xf32>
    %c0_46 = arith.constant 0 : index
    %c0_47 = arith.constant 0 : index
    %116 = vector.load %arg5[%c0_46, %c0_47] : memref<1x384xf32, #tpu.memory_space<vmem>>, vector<1x384xf32>
    %117 = arith.addf %115, %116 : vector<1x384xf32>
    %118 = vector.extract_strided_slice %113 {offsets = [0, 0], sizes = [1, 128], strides = [1, 1]} : vector<1x384xf32> to vector<1x128xf32>
    %119 = vector.extract_strided_slice %117 {offsets = [0, 0], sizes = [1, 128], strides = [1, 1]} : vector<1x384xf32> to vector<1x128xf32>
    %120 = arith.addf %118, %119 : vector<1x128xf32>
    %121 = arith.negf %120 : vector<1x128xf32>
    %122 = math.exp %121 : vector<1x128xf32>
    %cst_48 = arith.constant 1.000000e+00 : f32
    %123 = vector.broadcast %cst_48 : f32 to vector<1x128xf32>
    %124 = arith.addf %123, %122 : vector<1x128xf32>
    %125 = arith.divf %123, %124 : vector<1x128xf32>
    %126 = vector.extract_strided_slice %113 {offsets = [0, 128], sizes = [1, 128], strides = [1, 1]} : vector<1x384xf32> to vector<1x128xf32>
    %127 = vector.extract_strided_slice %117 {offsets = [0, 128], sizes = [1, 128], strides = [1, 1]} : vector<1x384xf32> to vector<1x128xf32>
    %128 = arith.addf %126, %127 : vector<1x128xf32>
    %129 = arith.negf %128 : vector<1x128xf32>
    %130 = math.exp %129 : vector<1x128xf32>
    %cst_49 = arith.constant 1.000000e+00 : f32
    %131 = vector.broadcast %cst_49 : f32 to vector<1x128xf32>
    %132 = arith.addf %131, %130 : vector<1x128xf32>
    %133 = arith.divf %131, %132 : vector<1x128xf32>
    %134 = vector.extract_strided_slice %113 {offsets = [0, 256], sizes = [1, 128], strides = [1, 1]} : vector<1x384xf32> to vector<1x128xf32>
    %135 = vector.extract_strided_slice %117 {offsets = [0, 256], sizes = [1, 128], strides = [1, 1]} : vector<1x384xf32> to vector<1x128xf32>
    %136 = arith.mulf %125, %135 : vector<1x128xf32>
    %137 = arith.addf %134, %136 : vector<1x128xf32>
    %138 = math.tanh %137 : vector<1x128xf32>
    %cst_50 = arith.constant 1.000000e+00 : f32
    %139 = vector.broadcast %cst_50 : f32 to vector<1x128xf32>
    %140 = arith.subf %139, %133 : vector<1x128xf32>
    %141 = arith.mulf %140, %138 : vector<1x128xf32>
    %142 = arith.mulf %133, %109 : vector<1x128xf32>
    %143 = arith.addf %141, %142 : vector<1x128xf32>
    %144 = arith.index_cast %c3_i32 : i32 to index
    %c0_51 = arith.constant 0 : index
    %145 = vector.load %arg11[%144, %c0_51] : memref<8x128xf32, #tpu.memory_space<vmem>>, vector<1x128xf32>
    tpu.vector_store %arg11[%144, %c0_51], %143 {strides = array<i32>} : memref<8x128xf32, #tpu.memory_space<vmem>>, vector<1x128xf32>,
    %c4_i32 = arith.constant 4 : i32
    %146 = arith.index_cast %c4_i32 : i32 to index
    %c0_52 = arith.constant 0 : index
    %147 = vector.load %arg10[%146, %c0_52] : memref<8x384xf32, #tpu.memory_space<vmem>>, vector<1x384xf32>
    %c0_53 = arith.constant 0 : index
    %c0_54 = arith.constant 0 : index
    %148 = vector.load %arg3[%c0_53, %c0_54] : memref<128x384xf32, #tpu.memory_space<vmem>>, vector<128x384xf32>
    %cst_55 = arith.constant dense<0.000000e+00> : vector<1x384xf32>
    %149 = tpu.matmul %143, %148, %cst_55 {dimension_numbers = #tpu.dot_dimension_numbers<[1], [0], [0], [1], [0, 0, 1, 1], [], []>} : vector<1x128xf32>, vector<128x384xf32>, vector<1x384xf32> -> vector<1x384xf32>
    %c0_56 = arith.constant 0 : index
    %c0_57 = arith.constant 0 : index
    %150 = vector.load %arg5[%c0_56, %c0_57] : memref<1x384xf32, #tpu.memory_space<vmem>>, vector<1x384xf32>
    %151 = arith.addf %149, %150 : vector<1x384xf32>
    %152 = vector.extract_strided_slice %147 {offsets = [0, 0], sizes = [1, 128], strides = [1, 1]} : vector<1x384xf32> to vector<1x128xf32>
    %153 = vector.extract_strided_slice %151 {offsets = [0, 0], sizes = [1, 128], strides = [1, 1]} : vector<1x384xf32> to vector<1x128xf32>
    %154 = arith.addf %152, %153 : vector<1x128xf32>
    %155 = arith.negf %154 : vector<1x128xf32>
    %156 = math.exp %155 : vector<1x128xf32>
    %cst_58 = arith.constant 1.000000e+00 : f32
    %157 = vector.broadcast %cst_58 : f32 to vector<1x128xf32>
    %158 = arith.addf %157, %156 : vector<1x128xf32>
    %159 = arith.divf %157, %158 : vector<1x128xf32>
    %160 = vector.extract_strided_slice %147 {offsets = [0, 128], sizes = [1, 128], strides = [1, 1]} : vector<1x384xf32> to vector<1x128xf32>
    %161 = vector.extract_strided_slice %151 {offsets = [0, 128], sizes = [1, 128], strides = [1, 1]} : vector<1x384xf32> to vector<1x128xf32>
    %162 = arith.addf %160, %161 : vector<1x128xf32>
    %163 = arith.negf %162 : vector<1x128xf32>
    %164 = math.exp %163 : vector<1x128xf32>
    %cst_59 = arith.constant 1.000000e+00 : f32
    %165 = vector.broadcast %cst_59 : f32 to vector<1x128xf32>
    %166 = arith.addf %165, %164 : vector<1x128xf32>
    %167 = arith.divf %165, %166 : vector<1x128xf32>
    %168 = vector.extract_strided_slice %147 {offsets = [0, 256], sizes = [1, 128], strides = [1, 1]} : vector<1x384xf32> to vector<1x128xf32>
    %169 = vector.extract_strided_slice %151 {offsets = [0, 256], sizes = [1, 128], strides = [1, 1]} : vector<1x384xf32> to vector<1x128xf32>
    %170 = arith.mulf %159, %169 : vector<1x128xf32>
    %171 = arith.addf %168, %170 : vector<1x128xf32>
    %172 = math.tanh %171 : vector<1x128xf32>
    %cst_60 = arith.constant 1.000000e+00 : f32
    %173 = vector.broadcast %cst_60 : f32 to vector<1x128xf32>
    %174 = arith.subf %173, %167 : vector<1x128xf32>
    %175 = arith.mulf %174, %172 : vector<1x128xf32>
    %176 = arith.mulf %167, %143 : vector<1x128xf32>
    %177 = arith.addf %175, %176 : vector<1x128xf32>
    %178 = arith.index_cast %c4_i32 : i32 to index
    %c0_61 = arith.constant 0 : index
    %179 = vector.load %arg11[%178, %c0_61] : memref<8x128xf32, #tpu.memory_space<vmem>>, vector<1x128xf32>
    tpu.vector_store %arg11[%178, %c0_61], %177 {strides = array<i32>} : memref<8x128xf32, #tpu.memory_space<vmem>>, vector<1x128xf32>,
    %c5_i32 = arith.constant 5 : i32
    %180 = arith.index_cast %c5_i32 : i32 to index
    %c0_62 = arith.constant 0 : index
    %181 = vector.load %arg10[%180, %c0_62] : memref<8x384xf32, #tpu.memory_space<vmem>>, vector<1x384xf32>
    %c0_63 = arith.constant 0 : index
    %c0_64 = arith.constant 0 : index
    %182 = vector.load %arg3[%c0_63, %c0_64] : memref<128x384xf32, #tpu.memory_space<vmem>>, vector<128x384xf32>
    %cst_65 = arith.constant dense<0.000000e+00> : vector<1x384xf32>
    %183 = tpu.matmul %177, %182, %cst_65 {dimension_numbers = #tpu.dot_dimension_numbers<[1], [0], [0], [1], [0, 0, 1, 1], [], []>} : vector<1x128xf32>, vector<128x384xf32>, vector<1x384xf32> -> vector<1x384xf32>
    %c0_66 = arith.constant 0 : index
    %c0_67 = arith.constant 0 : index
    %184 = vector.load %arg5[%c0_66, %c0_67] : memref<1x384xf32, #tpu.memory_space<vmem>>, vector<1x384xf32>
    %185 = arith.addf %183, %184 : vector<1x384xf32>
    %186 = vector.extract_strided_slice %181 {offsets = [0, 0], sizes = [1, 128], strides = [1, 1]} : vector<1x384xf32> to vector<1x128xf32>
    %187 = vector.extract_strided_slice %185 {offsets = [0, 0], sizes = [1, 128], strides = [1, 1]} : vector<1x384xf32> to vector<1x128xf32>
    %188 = arith.addf %186, %187 : vector<1x128xf32>
    %189 = arith.negf %188 : vector<1x128xf32>
    %190 = math.exp %189 : vector<1x128xf32>
    %cst_68 = arith.constant 1.000000e+00 : f32
    %191 = vector.broadcast %cst_68 : f32 to vector<1x128xf32>
    %192 = arith.addf %191, %190 : vector<1x128xf32>
    %193 = arith.divf %191, %192 : vector<1x128xf32>
    %194 = vector.extract_strided_slice %181 {offsets = [0, 128], sizes = [1, 128], strides = [1, 1]} : vector<1x384xf32> to vector<1x128xf32>
    %195 = vector.extract_strided_slice %185 {offsets = [0, 128], sizes = [1, 128], strides = [1, 1]} : vector<1x384xf32> to vector<1x128xf32>
    %196 = arith.addf %194, %195 : vector<1x128xf32>
    %197 = arith.negf %196 : vector<1x128xf32>
    %198 = math.exp %197 : vector<1x128xf32>
    %cst_69 = arith.constant 1.000000e+00 : f32
    %199 = vector.broadcast %cst_69 : f32 to vector<1x128xf32>
    %200 = arith.addf %199, %198 : vector<1x128xf32>
    %201 = arith.divf %199, %200 : vector<1x128xf32>
    %202 = vector.extract_strided_slice %181 {offsets = [0, 256], sizes = [1, 128], strides = [1, 1]} : vector<1x384xf32> to vector<1x128xf32>
    %203 = vector.extract_strided_slice %185 {offsets = [0, 256], sizes = [1, 128], strides = [1, 1]} : vector<1x384xf32> to vector<1x128xf32>
    %204 = arith.mulf %193, %203 : vector<1x128xf32>
    %205 = arith.addf %202, %204 : vector<1x128xf32>
    %206 = math.tanh %205 : vector<1x128xf32>
    %cst_70 = arith.constant 1.000000e+00 : f32
    %207 = vector.broadcast %cst_70 : f32 to vector<1x128xf32>
    %208 = arith.subf %207, %201 : vector<1x128xf32>
    %209 = arith.mulf %208, %206 : vector<1x128xf32>
    %210 = arith.mulf %201, %177 : vector<1x128xf32>
    %211 = arith.addf %209, %210 : vector<1x128xf32>
    %212 = arith.index_cast %c5_i32 : i32 to index
    %c0_71 = arith.constant 0 : index
    %213 = vector.load %arg11[%212, %c0_71] : memref<8x128xf32, #tpu.memory_space<vmem>>, vector<1x128xf32>
    tpu.vector_store %arg11[%212, %c0_71], %211 {strides = array<i32>} : memref<8x128xf32, #tpu.memory_space<vmem>>, vector<1x128xf32>,
    %c6_i32 = arith.constant 6 : i32
    %214 = arith.index_cast %c6_i32 : i32 to index
    %c0_72 = arith.constant 0 : index
    %215 = vector.load %arg10[%214, %c0_72] : memref<8x384xf32, #tpu.memory_space<vmem>>, vector<1x384xf32>
    %c0_73 = arith.constant 0 : index
    %c0_74 = arith.constant 0 : index
    %216 = vector.load %arg3[%c0_73, %c0_74] : memref<128x384xf32, #tpu.memory_space<vmem>>, vector<128x384xf32>
    %cst_75 = arith.constant dense<0.000000e+00> : vector<1x384xf32>
    %217 = tpu.matmul %211, %216, %cst_75 {dimension_numbers = #tpu.dot_dimension_numbers<[1], [0], [0], [1], [0, 0, 1, 1], [], []>} : vector<1x128xf32>, vector<128x384xf32>, vector<1x384xf32> -> vector<1x384xf32>
    %c0_76 = arith.constant 0 : index
    %c0_77 = arith.constant 0 : index
    %218 = vector.load %arg5[%c0_76, %c0_77] : memref<1x384xf32, #tpu.memory_space<vmem>>, vector<1x384xf32>
    %219 = arith.addf %217, %218 : vector<1x384xf32>
    %220 = vector.extract_strided_slice %215 {offsets = [0, 0], sizes = [1, 128], strides = [1, 1]} : vector<1x384xf32> to vector<1x128xf32>
    %221 = vector.extract_strided_slice %219 {offsets = [0, 0], sizes = [1, 128], strides = [1, 1]} : vector<1x384xf32> to vector<1x128xf32>
    %222 = arith.addf %220, %221 : vector<1x128xf32>
    %223 = arith.negf %222 : vector<1x128xf32>
    %224 = math.exp %223 : vector<1x128xf32>
    %cst_78 = arith.constant 1.000000e+00 : f32
    %225 = vector.broadcast %cst_78 : f32 to vector<1x128xf32>
    %226 = arith.addf %225, %224 : vector<1x128xf32>
    %227 = arith.divf %225, %226 : vector<1x128xf32>
    %228 = vector.extract_strided_slice %215 {offsets = [0, 128], sizes = [1, 128], strides = [1, 1]} : vector<1x384xf32> to vector<1x128xf32>
    %229 = vector.extract_strided_slice %219 {offsets = [0, 128], sizes = [1, 128], strides = [1, 1]} : vector<1x384xf32> to vector<1x128xf32>
    %230 = arith.addf %228, %229 : vector<1x128xf32>
    %231 = arith.negf %230 : vector<1x128xf32>
    %232 = math.exp %231 : vector<1x128xf32>
    %cst_79 = arith.constant 1.000000e+00 : f32
    %233 = vector.broadcast %cst_79 : f32 to vector<1x128xf32>
    %234 = arith.addf %233, %232 : vector<1x128xf32>
    %235 = arith.divf %233, %234 : vector<1x128xf32>
    %236 = vector.extract_strided_slice %215 {offsets = [0, 256], sizes = [1, 128], strides = [1, 1]} : vector<1x384xf32> to vector<1x128xf32>
    %237 = vector.extract_strided_slice %219 {offsets = [0, 256], sizes = [1, 128], strides = [1, 1]} : vector<1x384xf32> to vector<1x128xf32>
    %238 = arith.mulf %227, %237 : vector<1x128xf32>
    %239 = arith.addf %236, %238 : vector<1x128xf32>
    %240 = math.tanh %239 : vector<1x128xf32>
    %cst_80 = arith.constant 1.000000e+00 : f32
    %241 = vector.broadcast %cst_80 : f32 to vector<1x128xf32>
    %242 = arith.subf %241, %235 : vector<1x128xf32>
    %243 = arith.mulf %242, %240 : vector<1x128xf32>
    %244 = arith.mulf %235, %211 : vector<1x128xf32>
    %245 = arith.addf %243, %244 : vector<1x128xf32>
    %246 = arith.index_cast %c6_i32 : i32 to index
    %c0_81 = arith.constant 0 : index
    %247 = vector.load %arg11[%246, %c0_81] : memref<8x128xf32, #tpu.memory_space<vmem>>, vector<1x128xf32>
    tpu.vector_store %arg11[%246, %c0_81], %245 {strides = array<i32>} : memref<8x128xf32, #tpu.memory_space<vmem>>, vector<1x128xf32>,
    %c7_i32 = arith.constant 7 : i32
    %248 = arith.index_cast %c7_i32 : i32 to index
    %c0_82 = arith.constant 0 : index
    %249 = vector.load %arg10[%248, %c0_82] : memref<8x384xf32, #tpu.memory_space<vmem>>, vector<1x384xf32>
    %c0_83 = arith.constant 0 : index
    %c0_84 = arith.constant 0 : index
    %250 = vector.load %arg3[%c0_83, %c0_84] : memref<128x384xf32, #tpu.memory_space<vmem>>, vector<128x384xf32>
    %cst_85 = arith.constant dense<0.000000e+00> : vector<1x384xf32>
    %251 = tpu.matmul %245, %250, %cst_85 {dimension_numbers = #tpu.dot_dimension_numbers<[1], [0], [0], [1], [0, 0, 1, 1], [], []>} : vector<1x128xf32>, vector<128x384xf32>, vector<1x384xf32> -> vector<1x384xf32>
    %c0_86 = arith.constant 0 : index
    %c0_87 = arith.constant 0 : index
    %252 = vector.load %arg5[%c0_86, %c0_87] : memref<1x384xf32, #tpu.memory_space<vmem>>, vector<1x384xf32>
    %253 = arith.addf %251, %252 : vector<1x384xf32>
    %254 = vector.extract_strided_slice %249 {offsets = [0, 0], sizes = [1, 128], strides = [1, 1]} : vector<1x384xf32> to vector<1x128xf32>
    %255 = vector.extract_strided_slice %253 {offsets = [0, 0], sizes = [1, 128], strides = [1, 1]} : vector<1x384xf32> to vector<1x128xf32>
    %256 = arith.addf %254, %255 : vector<1x128xf32>
    %257 = arith.negf %256 : vector<1x128xf32>
    %258 = math.exp %257 : vector<1x128xf32>
    %cst_88 = arith.constant 1.000000e+00 : f32
    %259 = vector.broadcast %cst_88 : f32 to vector<1x128xf32>
    %260 = arith.addf %259, %258 : vector<1x128xf32>
    %261 = arith.divf %259, %260 : vector<1x128xf32>
    %262 = vector.extract_strided_slice %249 {offsets = [0, 128], sizes = [1, 128], strides = [1, 1]} : vector<1x384xf32> to vector<1x128xf32>
    %263 = vector.extract_strided_slice %253 {offsets = [0, 128], sizes = [1, 128], strides = [1, 1]} : vector<1x384xf32> to vector<1x128xf32>
    %264 = arith.addf %262, %263 : vector<1x128xf32>
    %265 = arith.negf %264 : vector<1x128xf32>
    %266 = math.exp %265 : vector<1x128xf32>
    %cst_89 = arith.constant 1.000000e+00 : f32
    %267 = vector.broadcast %cst_89 : f32 to vector<1x128xf32>
    %268 = arith.addf %267, %266 : vector<1x128xf32>
    %269 = arith.divf %267, %268 : vector<1x128xf32>
    %270 = vector.extract_strided_slice %249 {offsets = [0, 256], sizes = [1, 128], strides = [1, 1]} : vector<1x384xf32> to vector<1x128xf32>
    %271 = vector.extract_strided_slice %253 {offsets = [0, 256], sizes = [1, 128], strides = [1, 1]} : vector<1x384xf32> to vector<1x128xf32>
    %272 = arith.mulf %261, %271 : vector<1x128xf32>
    %273 = arith.addf %270, %272 : vector<1x128xf32>
    %274 = math.tanh %273 : vector<1x128xf32>
    %cst_90 = arith.constant 1.000000e+00 : f32
    %275 = vector.broadcast %cst_90 : f32 to vector<1x128xf32>
    %276 = arith.subf %275, %269 : vector<1x128xf32>
    %277 = arith.mulf %276, %274 : vector<1x128xf32>
    %278 = arith.mulf %269, %245 : vector<1x128xf32>
    %279 = arith.addf %277, %278 : vector<1x128xf32>
    %280 = arith.index_cast %c7_i32 : i32 to index
    %c0_91 = arith.constant 0 : index
    %281 = vector.load %arg11[%280, %c0_91] : memref<8x128xf32, #tpu.memory_space<vmem>>, vector<1x128xf32>
    tpu.vector_store %arg11[%280, %c0_91], %279 {strides = array<i32>} : memref<8x128xf32, #tpu.memory_space<vmem>>, vector<1x128xf32>,
    %c8_i32 = arith.constant 8 : i32
    %c0_92 = arith.constant 0 : index
    %c0_93 = arith.constant 0 : index
    %282 = vector.load %arg9[%c0_92, %c0_93] : memref<1x128xf32, #tpu.memory_space<vmem>>, vector<1x128xf32>
    tpu.vector_store %arg9[%c0_92, %c0_93], %279 {strides = array<i32>} : memref<1x128xf32, #tpu.memory_space<vmem>>, vector<1x128xf32>,
    %c0_94 = arith.constant 0 : index
    %c0_95 = arith.constant 0 : index
    %283 = vector.load %arg11[%c0_94, %c0_95] : memref<8x128xf32, #tpu.memory_space<vmem>>, vector<8x128xf32>
    %c0_96 = arith.constant 0 : index
    %c0_97 = arith.constant 0 : index
    %284 = vector.load %arg6[%c0_96, %c0_97] : memref<128x128xf32, #tpu.memory_space<vmem>>, vector<128x128xf32>
    %cst_98 = arith.constant dense<0.000000e+00> : vector<8x128xf32>
    %285 = tpu.matmul %283, %284, %cst_98 {dimension_numbers = #tpu.dot_dimension_numbers<[1], [0], [0], [1], [0, 0, 1, 1], [], []>} : vector<8x128xf32>, vector<128x128xf32>, vector<8x128xf32> -> vector<8x128xf32>
    %c0_99 = arith.constant 0 : index
    %c0_100 = arith.constant 0 : index
    %286 = vector.load %arg7[%c0_99, %c0_100] : memref<1x128xf32, #tpu.memory_space<vmem>>, vector<1x128xf32>
    %287 = vector.broadcast %286 : vector<1x128xf32> to vector<8x128xf32>
    %288 = arith.addf %285, %287 : vector<8x128xf32>
    %cst_101 = arith.constant dense<0xFF800000> : vector<8xf32>
    %289 = vector.multi_reduction <maximumf>, %288, %cst_101 [1] : vector<8x128xf32> to vector<8xf32>
    %290 = vector.shape_cast %289 : vector<8xf32> to vector<8x1xf32>
    %291 = vector.broadcast %290 : vector<8x1xf32> to vector<8x128xf32>
    %292 = arith.subf %288, %291 : vector<8x128xf32>
    %293 = math.exp %292 : vector<8x128xf32>
    %cst_102 = arith.constant dense<0.000000e+00> : vector<8xf32>
    %294 = vector.multi_reduction <add>, %293, %cst_102 [1] : vector<8x128xf32> to vector<8xf32>
    %295 = vector.shape_cast %294 : vector<8xf32> to vector<8x1xf32>
    %296 = math.log %295 : vector<8x1xf32>
    %297 = vector.broadcast %296 : vector<8x1xf32> to vector<8x128xf32>
    %298 = arith.subf %292, %297 : vector<8x128xf32>
    %c0_103 = arith.constant 0 : index
    %c0_104 = arith.constant 0 : index
    %299 = vector.load %arg8[%c0_103, %c0_104] : memref<8x128xf32, #tpu.memory_space<vmem>>, vector<8x128xf32>
    tpu.vector_store %arg8[%c0_103, %c0_104], %298 {strides = array<i32>} : memref<8x128xf32, #tpu.memory_space<vmem>>, vector<8x128xf32>,
    return
  }
}

</mosaic_0001>

<llo_original>
// kernel: tpu_custom_call.1
$region0: #{tpu_custom_call.1}
  #allocation0 [shape = 'u32[]', space=smem, size = 0x4, offset = 0x4, fixed_abs, tag = 'smem constant byte address 0x4 - core index']
  #allocation1 [shape = 'u32[144,128]{1,0:T(1,128)}', space=vmem, size = 0x12000, scoped, tag = 'internal scratch']
  #allocation2 [shape = 'f32[8,384]{1,0:T(8,128)}', space=vmem, size = 0x3000, scoped, tag = 'scratch operand']
  #allocation3 [shape = 'f32[8,128]{1,0:T(8,128)}', space=vmem, size = 0x1000, scoped, tag = 'scratch operand']
  %s0 = inlined_call_operand.hbm [shape: f32[8,128], index: 0, kind: input, shape index: {}]
  %s1 = inlined_call_operand.vmem [shape: f32[1,128], index: 1, kind: input, shape index: {}]
  %s2 = inlined_call_operand.hbm [shape: f32[128,384], index: 2, kind: input, shape index: {}]
  %s3 = inlined_call_operand.hbm [shape: f32[128,384], index: 3, kind: input, shape index: {}]
  %s4 = inlined_call_operand.vmem [shape: f32[1,384], index: 4, kind: input, shape index: {}]
  %s5 = inlined_call_operand.vmem [shape: f32[1,384], index: 5, kind: input, shape index: {}]
  %s6 = inlined_call_operand.hbm [shape: f32[128,128], index: 6, kind: input, shape index: {}]
  %s7 = inlined_call_operand.vmem [shape: f32[1,128], index: 7, kind: input, shape index: {}]
  %s8 = inlined_call_operand.hbm [shape: f32[8,128], index: 8, kind: output, shape index: {0}]
  %s9 = inlined_call_operand.hbm [shape: f32[1,128], index: 9, kind: output, shape index: {1}]
  %10 = xla_tuple %s8, %s9
  %s11 = sld [smem:[#allocation0]]
  $region66: #{tpu_custom_call.1} parent=0
    _
  %s13 = ssub.s32 1, %s11
  %s14 = scalar_select 0, %s13, %s11
  $region1: #{tpu_custom_call.1} parent=0
    #allocation4 [shape = 'u8[4096]{0}', space=vmem, size = 0x1000, scoped, tag = 'input window, operand 0, single buffered']
    #allocation5 [shape = 's32[1]{0}', space=sflag, size = 0x4, scoped, tag = 'scoped memory for tpu_custom_call.1']
    #allocation6 [shape = 's32[1]{0}', space=sflag, size = 0x4, scoped, tag = 'scoped memory for tpu_custom_call.1']
    #allocation7 [shape = 'u8[196608]{0}', space=vmem, size = 0x30000, scoped, tag = 'input window, operand 2, single buffered']
    #allocation8 [shape = 's32[1]{0}', space=sflag, size = 0x4, scoped, tag = 'scoped memory for tpu_custom_call.1']
    #allocation9 [shape = 'u8[196608]{0}', space=vmem, size = 0x30000, scoped, tag = 'input window, operand 3, single buffered']
    #allocation10 [shape = 'u8[65536]{0}', space=vmem, size = 0x10000, scoped, tag = 'input window, operand 6, single buffered']
    #allocation11 [shape = 's32[1]{0}', space=sflag, size = 0x4, scoped, tag = 'scoped memory for tpu_custom_call.1']
    #allocation12 [shape = 'u8[4096]{0}', space=vmem, size = 0x1000, scoped, tag = 'output window, operand 0, single buffered']
    #allocation13 [shape = 'u8[512]{0}', space=vmem, size = 0x400, scoped, tag = 'output window, operand 1, single buffered']
    #allocation14 [shape = 's32[1]{0}', space=sflag, size = 0x4, scoped, tag = 'scoped memory for tpu_custom_call.1']
    %15 = vsyncpa [#allocation5], 0
    %16 = vsyncpa [#allocation8], 0
    %17 = vsyncpa [#allocation11], 0
    %18 = vsyncpa [#allocation6], 0
    %19 = vsyncpa [#allocation14], 0
    // Predicated region
    $region2: #{tpu_custom_call.1} parent=1 // pred_check
      _
    $region3: #{tpu_custom_call.1} parent=1 // pred_check_branch
      %21 = sbr.rel (0) target = $region5
    $region4: #{tpu_custom_call.1} parent=1 // pred_region
      %s23 = ssub.s32 128, 128
      %24 = vsyncadd [#allocation5], %s23
      %s26 = sshll.u32 [#allocation4], 4
      %s27 = int_to_ptr.vmem [resolvable:$true] %s26
      %29 = dma.hbm_to_vmem [thread:$0]  %s0, 128, %s27, [#allocation5]
    $region5: #{tpu_custom_call.1} parent=1 // pred_fallthru
      _
    // Predicated region
    $region6: #{tpu_custom_call.1} parent=1 // pred_check
      _
    $region7: #{tpu_custom_call.1} parent=1 // pred_check_branch
      %31 = sbr.rel (0) target = $region9
    $region8: #{tpu_custom_call.1} parent=1 // pred_region
      _
    $region9: #{tpu_custom_call.1} parent=1 // pred_fallthru
      _
    // Predicated region
    $region10: #{tpu_custom_call.1} parent=1 // pred_check
      _
    $region11: #{tpu_custom_call.1} parent=1 // pred_check_branch
      %33 = sbr.rel (0) target = $region13
    $region12: #{tpu_custom_call.1} parent=1 // pred_region
      %s35 = ssub.s32 6144, 6144
      %36 = vsyncadd [#allocation8], %s35
      %s37 = sshll.u32 [#allocation7], 4
      %s38 = int_to_ptr.vmem [resolvable:$true] %s37
      %43 = dma.hbm_to_vmem [thread:$0]  %s2, 6144, %s38, [#allocation8], 384, 384, 24
    $region13: #{tpu_custom_call.1} parent=1 // pred_fallthru
      _
    // Predicated region
    $region14: #{tpu_custom_call.1} parent=1 // pred_check
      _
    $region15: #{tpu_custom_call.1} parent=1 // pred_check_branch
      %45 = sbr.rel (0) target = $region17
    $region16: #{tpu_custom_call.1} parent=1 // pred_region
      %s47 = ssub.s32 6144, 6144
      %48 = vsyncadd [#allocation8], %s47
      %s49 = sshll.u32 [#allocation9], 4
      %s50 = int_to_ptr.vmem [resolvable:$true] %s49
      %55 = dma.hbm_to_vmem [thread:$0]  %s3, 6144, %s50, [#allocation8], 384, 384, 24
    $region17: #{tpu_custom_call.1} parent=1 // pred_fallthru
      _
    // Predicated region
    $region18: #{tpu_custom_call.1} parent=1 // pred_check
      _
    $region19: #{tpu_custom_call.1} parent=1 // pred_check_branch
      %57 = sbr.rel (0) target = $region21
    $region20: #{tpu_custom_call.1} parent=1 // pred_region
      _
    $region21: #{tpu_custom_call.1} parent=1 // pred_fallthru
      _
    // Predicated region
    $region22: #{tpu_custom_call.1} parent=1 // pred_check
      _
    $region23: #{tpu_custom_call.1} parent=1 // pred_check_branch
      %59 = sbr.rel (0) target = $region25
    $region24: #{tpu_custom_call.1} parent=1 // pred_region
      _
    $region25: #{tpu_custom_call.1} parent=1 // pred_fallthru
      _
    // Predicated region
    $region26: #{tpu_custom_call.1} parent=1 // pred_check
      _
    $region27: #{tpu_custom_call.1} parent=1 // pred_check_branch
      %61 = sbr.rel (0) target = $region29
    $region28: #{tpu_custom_call.1} parent=1 // pred_region
      %s63 = ssub.s32 2048, 2048
      %64 = vsyncadd [#allocation11], %s63
      %s65 = sshll.u32 [#allocation10], 4
      %s66 = int_to_ptr.vmem [resolvable:$true] %s65
      %71 = dma.hbm_to_vmem [thread:$0]  %s6, 2048, %s66, [#allocation11], 128, 128, 8
    $region29: #{tpu_custom_call.1} parent=1 // pred_fallthru
      _
    // Predicated region
    $region30: #{tpu_custom_call.1} parent=1 // pred_check
      _
    $region31: #{tpu_custom_call.1} parent=1 // pred_check_branch
      %73 = sbr.rel (0) target = $region33
    $region32: #{tpu_custom_call.1} parent=1 // pred_region
      _
    $region33: #{tpu_custom_call.1} parent=1 // pred_fallthru
      _
    // Predicated region
    $region34: #{tpu_custom_call.1} parent=1 // pred_check
      _
    $region35: #{tpu_custom_call.1} parent=1 // pred_check_branch
      %75 = sbr.rel (0) target = $region37
    $region36: #{tpu_custom_call.1} parent=1 // pred_region
      %76 = dma.done [#allocation5], 128
    $region37: #{tpu_custom_call.1} parent=1 // pred_fallthru
      _
    // Predicated region
    $region38: #{tpu_custom_call.1} parent=1 // pred_check
      _
    $region39: #{tpu_custom_call.1} parent=1 // pred_check_branch
      %78 = sbr.rel (0) target = $region41
    $region40: #{tpu_custom_call.1} parent=1 // pred_region
      %79 = dma.done [#allocation8], 6144
    $region41: #{tpu_custom_call.1} parent=1 // pred_fallthru
      _
    // Predicated region
    $region42: #{tpu_custom_call.1} parent=1 // pred_check
      _
    $region43: #{tpu_custom_call.1} parent=1 // pred_check_branch
      %81 = sbr.rel (0) target = $region45
    $region44: #{tpu_custom_call.1} parent=1 // pred_region
      %82 = dma.done [#allocation8], 6144
    $region45: #{tpu_custom_call.1} parent=1 // pred_fallthru
      _
    // Predicated region
    $region46: #{tpu_custom_call.1} parent=1 // pred_check
      _
    $region47: #{tpu_custom_call.1} parent=1 // pred_check_branch
      %84 = sbr.rel (0) target = $region49
    $region48: #{tpu_custom_call.1} parent=1 // pred_region
      %85 = dma.done [#allocation11], 2048
    $region49: #{tpu_custom_call.1} parent=1 // pred_fallthru
      _
    %v86 = vld [vmem:[#allocation4] sm:$0xff]
    %v87 = vld [vmem:[#allocation7] sm:$0xff]
    %v88 = vld [vmem:[#allocation7 + $0x8] sm:$0xff]
    %v89 = vld [vmem:[#allocation7 + $0x10] sm:$0xff]
    %v90 = vld [vmem:[#allocation7 + $0x18] sm:$0xff]
    %v91 = vld [vmem:[#allocation7 + $0x20] sm:$0xff]
    %v92 = vld [vmem:[#allocation7 + $0x28] sm:$0xff]
    %v93 = vld [vmem:[#allocation7 + $0x30] sm:$0xff]
    %v94 = vld [vmem:[#allocation7 + $0x38] sm:$0xff]
    %v95 = vld [vmem:[#allocation7 + $0x40] sm:$0xff]
    %v96 = vld [vmem:[#allocation7 + $0x48] sm:$0xff]
    %v97 = vld [vmem:[#allocation7 + $0x50] sm:$0xff]
    %v98 = vld [vmem:[#allocation7 + $0x58] sm:$0xff]
    %v99 = vld [vmem:[#allocation7 + $0x60] sm:$0xff]
    %v100 = vld [vmem:[#allocation7 + $0x68] sm:$0xff]
    %v101 = vld [vmem:[#allocation7 + $0x70] sm:$0xff]
    %v102 = vld [vmem:[#allocation7 + $0x78] sm:$0xff]
    %v103 = vld [vmem:[#allocation7 + $0x80] sm:$0xff]
    %v104 = vld [vmem:[#allocation7 + $0x88] sm:$0xff]
    %v105 = vld [vmem:[#allocation7 + $0x90] sm:$0xff]
    %v106 = vld [vmem:[#allocation7 + $0x98] sm:$0xff]
    %v107 = vld [vmem:[#allocation7 + $0xa0] sm:$0xff]
    %v108 = vld [vmem:[#allocation7 + $0xa8] sm:$0xff]
    %v109 = vld [vmem:[#allocation7 + $0xb0] sm:$0xff]
    %v110 = vld [vmem:[#allocation7 + $0xb8] sm:$0xff]
    %v111 = vld [vmem:[#allocation7 + $0xc0] sm:$0xff]
    %v112 = vld [vmem:[#allocation7 + $0xc8] sm:$0xff]
    %v113 = vld [vmem:[#allocation7 + $0xd0] sm:$0xff]
    %v114 = vld [vmem:[#allocation7 + $0xd8] sm:$0xff]
    %v115 = vld [vmem:[#allocation7 + $0xe0] sm:$0xff]
    %v116 = vld [vmem:[#allocation7 + $0xe8] sm:$0xff]
    %v117 = vld [vmem:[#allocation7 + $0xf0] sm:$0xff]
    %v118 = vld [vmem:[#allocation7 + $0xf8] sm:$0xff]
    %v119 = vld [vmem:[#allocation7 + $0x100] sm:$0xff]
    %v120 = vld [vmem:[#allocation7 + $0x108] sm:$0xff]
    %v121 = vld [vmem:[#allocation7 + $0x110] sm:$0xff]
    %v122 = vld [vmem:[#allocation7 + $0x118] sm:$0xff]
    %v123 = vld [vmem:[#allocation7 + $0x120] sm:$0xff]
    %v124 = vld [vmem:[#allocation7 + $0x128] sm:$0xff]
    %v125 = vld [vmem:[#allocation7 + $0x130] sm:$0xff]
    %v126 = vld [vmem:[#allocation7 + $0x138] sm:$0xff]
    %v127 = vld [vmem:[#allocation7 + $0x140] sm:$0xff]
    %v128 = vld [vmem:[#allocation7 + $0x148] sm:$0xff]
    %v129 = vld [vmem:[#allocation7 + $0x150] sm:$0xff]
    %v130 = vld [vmem:[#allocation7 + $0x158] sm:$0xff]
    %v131 = vld [vmem:[#allocation7 + $0x160] sm:$0xff]
    %v132 = vld [vmem:[#allocation7 + $0x168] sm:$0xff]
    %v133 = vld [vmem:[#allocation7 + $0x170] sm:$0xff]
    %v134 = vld [vmem:[#allocation7 + $0x178] sm:$0xff]
    %v135 = vld [vmem:[%s4] sm:$0x7]
    %v137 = vlaneseq
    %v138 = vshrl.u32 %v137, 7
    %v139 = vsub.s32 0, %v138
    %v140 = vrot.slane %v135, %v139
    %v141 = vlaneseq
    %v142 = vshrl.u32 %v141, 7
    %v143 = vsub.s32 1, %v142
    %v144 = vrot.slane %v135, %v143
    %v145 = vlaneseq
    %v146 = vshrl.u32 %v145, 7
    %v147 = vsub.s32 2, %v146
    %v148 = vrot.slane %v135, %v147
    %152 = vmatprep.subr.mxu0 %v88
    %153 = vmatpush1.msra.mxu0 %v87
    %154 = vmatprep.subr.mxu0 %v91
    %155 = vmatpush1.msra.mxu0 %v90
    %156 = vmatprep.subr.mxu0 %v94
    %157 = vmatpush1.msra.mxu0 %v93
    %158 = vmatprep.subr.mxu0 %v97
    %159 = vmatpush1.msra.mxu0 %v96
    %160 = vmatprep.subr.mxu0 %v100
    %161 = vmatpush1.msra.mxu0 %v99
    %162 = vmatprep.subr.mxu0 %v103
    %163 = vmatpush1.msra.mxu0 %v102
    %164 = vmatprep.subr.mxu0 %v106
    %165 = vmatpush1.msra.mxu0 %v105
    %166 = vmatprep.subr.mxu0 %v109
    %167 = vmatpush1.msra.mxu0 %v108
    %168 = vmatprep.subr.mxu0 %v112
    %169 = vmatpush1.msra.mxu0 %v111
    %170 = vmatprep.subr.mxu0 %v115
    %171 = vmatpush1.msra.mxu0 %v114
    %172 = vmatprep.subr.mxu0 %v118
    %173 = vmatpush1.msra.mxu0 %v117
    %174 = vmatprep.subr.mxu0 %v121
    %175 = vmatpush1.msra.mxu0 %v120
    %176 = vmatprep.subr.mxu0 %v124
    %177 = vmatpush1.msra.mxu0 %v123
    %178 = vmatprep.subr.mxu0 %v127
    %179 = vmatpush1.msra.mxu0 %v126
    %180 = vmatprep.subr.mxu0 %v130
    %181 = vmatpush1.msra.mxu0 %v129
    %182 = vmatprep.subr.mxu0 %v133
    %183 = vmatpush1.msra.mxu0 %v132
    %184 = vmatprep.subr.mxu0 0.0
    %185 = vmatpush1.msra.mxu0 0.0
    %186 = vmatprep.subr.mxu0 0.0
    %187 = vmatpush1.msra.mxu0 0.0
    %188 = vmatprep.subr.mxu0 0.0
    %189 = vmatpush1.msra.mxu0 0.0
    %190 = vmatprep.subr.mxu0 0.0
    %191 = vmatpush1.msra.mxu0 0.0
    %192 = vmatprep.subr.mxu0 0.0
    %193 = vmatpush1.msra.mxu0 0.0
    %194 = vmatprep.subr.mxu0 0.0
    %195 = vmatpush1.msra.mxu0 0.0
    %196 = vmatprep.subr.mxu0 0.0
    %197 = vmatpush1.msra.mxu0 0.0
    %198 = vmatprep.subr.mxu0 0.0
    %199 = vmatpush1.msra.mxu0 0.0
    %200 = vmatprep.subr.mxu0 0.0
    %201 = vmatpush1.msra.mxu0 0.0
    %202 = vmatprep.subr.mxu0 0.0
    %203 = vmatpush1.msra.mxu0 0.0
    %204 = vmatprep.subr.mxu0 0.0
    %205 = vmatpush1.msra.mxu0 0.0
    %206 = vmatprep.subr.mxu0 0.0
    %207 = vmatpush1.msra.mxu0 0.0
    %208 = vmatprep.subr.mxu0 0.0
    %209 = vmatpush1.msra.mxu0 0.0
    %210 = vmatprep.subr.mxu0 0.0
    %211 = vmatpush1.msra.mxu0 0.0
    %212 = vmatprep.subr.mxu0 0.0
    %213 = vmatpush1.msra.mxu0 0.0
    %214 = vmatprep.subr.mxu0 0.0
    %215 = vmatpush1.msra.mxu0 0.0
    %216 = vmatprep.mubr.f32.mxu0 0.0
    %217 = vmatmul.mubr.f32.gmra.mrb[0].mxu0 %v86
    %v218 = vpop.f32.mrb[0].mxu0
    %v219 = vadd.f32 %v140, %v218
    %v220 = vpop.f32.mrb[0].mxu0
    %v221 = vadd.f32 %v144, %v220
    %222 = vdwg.mxu0
    %223 = vmatprep.subr.mxu0 0.0
    %224 = vmatpush1.msra.mxu0 %v89
    %225 = vmatprep.subr.mxu0 0.0
    %226 = vmatpush1.msra.mxu0 %v92
    %227 = vmatprep.subr.mxu0 0.0
    %228 = vmatpush1.msra.mxu0 %v95
    %229 = vmatprep.subr.mxu0 0.0
    %230 = vmatpush1.msra.mxu0 %v98
    %231 = vmatprep.subr.mxu0 0.0
    %232 = vmatpush1.msra.mxu0 %v101
    %233 = vmatprep.subr.mxu0 0.0
    %234 = vmatpush1.msra.mxu0 %v104
    %235 = vmatprep.subr.mxu0 0.0
    %236 = vmatpush1.msra.mxu0 %v107
    %237 = vmatprep.subr.mxu0 0.0
    %238 = vmatpush1.msra.mxu0 %v110
    %239 = vmatprep.subr.mxu0 0.0
    %240 = vmatpush1.msra.mxu0 %v113
    %241 = vmatprep.subr.mxu0 0.0
    %242 = vmatpush1.msra.mxu0 %v116
    %243 = vmatprep.subr.mxu0 0.0
    %244 = vmatpush1.msra.mxu0 %v119
    %245 = vmatprep.subr.mxu0 0.0
    %246 = vmatpush1.msra.mxu0 %v122
    %247 = vmatprep.subr.mxu0 0.0
    %248 = vmatpush1.msra.mxu0 %v125
    %249 = vmatprep.subr.mxu0 0.0
    %250 = vmatpush1.msra.mxu0 %v128
    %251 = vmatprep.subr.mxu0 0.0
    %252 = vmatpush1.msra.mxu0 %v131
    %253 = vmatprep.subr.mxu0 0.0
    %254 = vmatpush1.msra.mxu0 %v134
    %255 = vmatprep.subr.mxu0 0.0
    %256 = vmatpush1.msra.mxu0 0.0
    %257 = vmatprep.subr.mxu0 0.0
    %258 = vmatpush1.msra.mxu0 0.0
    %259 = vmatprep.subr.mxu0 0.0
    %260 = vmatpush1.msra.mxu0 0.0
    %261 = vmatprep.subr.mxu0 0.0
    %262 = vmatpush1.msra.mxu0 0.0
    %263 = vmatprep.subr.mxu0 0.0
    %264 = vmatpush1.msra.mxu0 0.0
    %265 = vmatprep.subr.mxu0 0.0
    %266 = vmatpush1.msra.mxu0 0.0
    %267 = vmatprep.subr.mxu0 0.0
    %268 = vmatpush1.msra.mxu0 0.0
    %269 = vmatprep.subr.mxu0 0.0
    %270 = vmatpush1.msra.mxu0 0.0
    %271 = vmatprep.subr.mxu0 0.0
    %272 = vmatpush1.msra.mxu0 0.0
    %273 = vmatprep.subr.mxu0 0.0
    %274 = vmatpush1.msra.mxu0 0.0
    %275 = vmatprep.subr.mxu0 0.0
    %276 = vmatpush1.msra.mxu0 0.0
    %277 = vmatprep.subr.mxu0 0.0
    %278 = vmatpush1.msra.mxu0 0.0
    %279 = vmatprep.subr.mxu0 0.0
    %280 = vmatpush1.msra.mxu0 0.0
    %281 = vmatprep.subr.mxu0 0.0
    %282 = vmatpush1.msra.mxu0 0.0
    %283 = vmatprep.subr.mxu0 0.0
    %284 = vmatpush1.msra.mxu0 0.0
    %285 = vmatprep.subr.mxu0 0.0
    %286 = vmatpush1.msra.mxu0 0.0
    %287 = vmatprep.mubr.f32.mxu0 0.0
    %288 = vmatmul.mubr.f32.gmra.mrb[0].mxu0 %v86
    %v289 = vpop.f32.mrb[0].mxu0
    %v290 = vadd.f32 %v148, %v289
    %v291 = vpop.f32.mrb[0].mxu0
    %292 = vdwg.mxu0
    %293 = vst [vmem:[#allocation2] sm:$0xff] %v219
    %294 = vst [vmem:[#allocation2 + $0x8] sm:$0xff] %v221
    %295 = vst [vmem:[#allocation2 + $0x10] sm:$0xff] %v290
    %296 = vst [vmem:[#allocation3] sm:$0xff] 0.0
    %v297 = vld [vmem:[%s1] sm:$0x1]
    %v298 = vld [vmem:[#allocation2] ss:$8 sm:$0x7]
    %v299 = vld [vmem:[#allocation9] sm:$0xff]
    %v300 = vld [vmem:[#allocation9 + $0x8] sm:$0xff]
    %v301 = vld [vmem:[#allocation9 + $0x10] sm:$0xff]
    %v302 = vld [vmem:[#allocation9 + $0x18] sm:$0xff]
    %v303 = vld [vmem:[#allocation9 + $0x20] sm:$0xff]
    %v304 = vld [vmem:[#allocation9 + $0x28] sm:$0xff]
    %v305 = vld [vmem:[#allocation9 + $0x30] sm:$0xff]
    %v306 = vld [vmem:[#allocation9 + $0x38] sm:$0xff]
    %v307 = vld [vmem:[#allocation9 + $0x40] sm:$0xff]
    %v308 = vld [vmem:[#allocation9 + $0x48] sm:$0xff]
    %v309 = vld [vmem:[#allocation9 + $0x50] sm:$0xff]
    %v310 = vld [vmem:[#allocation9 + $0x58] sm:$0xff]
    %v311 = vld [vmem:[#allocation9 + $0x60] sm:$0xff]
    %v312 = vld [vmem:[#allocation9 + $0x68] sm:$0xff]
    %v313 = vld [vmem:[#allocation9 + $0x70] sm:$0xff]
    %v314 = vld [vmem:[#allocation9 + $0x78] sm:$0xff]
    %v315 = vld [vmem:[#allocation9 + $0x80] sm:$0xff]
    %v316 = vld [vmem:[#allocation9 + $0x88] sm:$0xff]
    %v317 = vld [vmem:[#allocation9 + $0x90] sm:$0xff]
    %v318 = vld [vmem:[#allocation9 + $0x98] sm:$0xff]
    %v319 = vld [vmem:[#allocation9 + $0xa0] sm:$0xff]
    %v320 = vld [vmem:[#allocation9 + $0xa8] sm:$0xff]
    %v321 = vld [vmem:[#allocation9 + $0xb0] sm:$0xff]
    %v322 = vld [vmem:[#allocation9 + $0xb8] sm:$0xff]
    %v323 = vld [vmem:[#allocation9 + $0xc0] sm:$0xff]
    %v324 = vld [vmem:[#allocation9 + $0xc8] sm:$0xff]
    %v325 = vld [vmem:[#allocation9 + $0xd0] sm:$0xff]
    %v326 = vld [vmem:[#allocation9 + $0xd8] sm:$0xff]
    %v327 = vld [vmem:[#allocation9 + $0xe0] sm:$0xff]
    %v328 = vld [vmem:[#allocation9 + $0xe8] sm:$0xff]
    %v329 = vld [vmem:[#allocation9 + $0xf0] sm:$0xff]
    %v330 = vld [vmem:[#allocation9 + $0xf8] sm:$0xff]
    %v331 = vld [vmem:[#allocation9 + $0x100] sm:$0xff]
    %v332 = vld [vmem:[#allocation9 + $0x108] sm:$0xff]
    %v333 = vld [vmem:[#allocation9 + $0x110] sm:$0xff]
    %v334 = vld [vmem:[#allocation9 + $0x118] sm:$0xff]
    %v335 = vld [vmem:[#allocation9 + $0x120] sm:$0xff]
    %v336 = vld [vmem:[#allocation9 + $0x128] sm:$0xff]
    %v337 = vld [vmem:[#allocation9 + $0x130] sm:$0xff]
    %v338 = vld [vmem:[#allocation9 + $0x138] sm:$0xff]
    %v339 = vld [vmem:[#allocation9 + $0x140] sm:$0xff]
    %v340 = vld [vmem:[#allocation9 + $0x148] sm:$0xff]
    %v341 = vld [vmem:[#allocation9 + $0x150] sm:$0xff]
    %v342 = vld [vmem:[#allocation9 + $0x158] sm:$0xff]
    %v343 = vld [vmem:[#allocation9 + $0x160] sm:$0xff]
    %v344 = vld [vmem:[#allocation9 + $0x168] sm:$0xff]
    %v345 = vld [vmem:[#allocation9 + $0x170] sm:$0xff]
    %v346 = vld [vmem:[#allocation9 + $0x178] sm:$0xff]
    %v347 = vld [vmem:[%s5] sm:$0x7]
    %v349 = vlaneseq
    %v350 = vshrl.u32 %v349, 7
    %v351 = vsub.s32 0, %v350
    %v352 = vrot.slane %v347, %v351
    %v353 = vlaneseq
    %v354 = vshrl.u32 %v353, 7
    %v355 = vsub.s32 1, %v354
    %v356 = vrot.slane %v347, %v355
    %v357 = vlaneseq
    %v358 = vshrl.u32 %v357, 7
    %v359 = vsub.s32 2, %v358
    %v360 = vrot.slane %v347, %v359
    %364 = vmatprep.subr.mxu0 %v300
    %365 = vmatpush1.msra.mxu0 %v299
    %366 = vmatprep.subr.mxu0 %v303
    %367 = vmatpush1.msra.mxu0 %v302
    %368 = vmatprep.subr.mxu0 %v306
    %369 = vmatpush1.msra.mxu0 %v305
    %370 = vmatprep.subr.mxu0 %v309
    %371 = vmatpush1.msra.mxu0 %v308
    %372 = vmatprep.subr.mxu0 %v312
    %373 = vmatpush1.msra.mxu0 %v311
    %374 = vmatprep.subr.mxu0 %v315
    %375 = vmatpush1.msra.mxu0 %v314
    %376 = vmatprep.subr.mxu0 %v318
    %377 = vmatpush1.msra.mxu0 %v317
    %378 = vmatprep.subr.mxu0 %v321
    %379 = vmatpush1.msra.mxu0 %v320
    %380 = vmatprep.subr.mxu0 %v324
    %381 = vmatpush1.msra.mxu0 %v323
    %382 = vmatprep.subr.mxu0 %v327
    %383 = vmatpush1.msra.mxu0 %v326
    %384 = vmatprep.subr.mxu0 %v330
    %385 = vmatpush1.msra.mxu0 %v329
    %386 = vmatprep.subr.mxu0 %v333
    %387 = vmatpush1.msra.mxu0 %v332
    %388 = vmatprep.subr.mxu0 %v336
    %389 = vmatpush1.msra.mxu0 %v335
    %390 = vmatprep.subr.mxu0 %v339
    %391 = vmatpush1.msra.mxu0 %v338
    %392 = vmatprep.subr.mxu0 %v342
    %393 = vmatpush1.msra.mxu0 %v341
    %394 = vmatprep.subr.mxu0 %v345
    %395 = vmatpush1.msra.mxu0 %v344
    %396 = vmatprep.subr.mxu0 0.0
    %397 = vmatpush1.msra.mxu0 0.0
    %398 = vmatprep.subr.mxu0 0.0
    %399 = vmatpush1.msra.mxu0 0.0
    %400 = vmatprep.subr.mxu0 0.0
    %401 = vmatpush1.msra.mxu0 0.0
    %402 = vmatprep.subr.mxu0 0.0
    %403 = vmatpush1.msra.mxu0 0.0
    %404 = vmatprep.subr.mxu0 0.0
    %405 = vmatpush1.msra.mxu0 0.0
    %406 = vmatprep.subr.mxu0 0.0
    %407 = vmatpush1.msra.mxu0 0.0
    %408 = vmatprep.subr.mxu0 0.0
    %409 = vmatpush1.msra.mxu0 0.0
    %410 = vmatprep.subr.mxu0 0.0
    %411 = vmatpush1.msra.mxu0 0.0
    %412 = vmatprep.subr.mxu0 0.0
    %413 = vmatpush1.msra.mxu0 0.0
    %414 = vmatprep.subr.mxu0 0.0
    %415 = vmatpush1.msra.mxu0 0.0
    %416 = vmatprep.subr.mxu0 0.0
    %417 = vmatpush1.msra.mxu0 0.0
    %418 = vmatprep.subr.mxu0 0.0
    %419 = vmatpush1.msra.mxu0 0.0
    %420 = vmatprep.subr.mxu0 0.0
    %421 = vmatpush1.msra.mxu0 0.0
    %422 = vmatprep.subr.mxu0 0.0
    %423 = vmatpush1.msra.mxu0 0.0
    %424 = vmatprep.subr.mxu0 0.0
    %425 = vmatpush1.msra.mxu0 0.0
    %426 = vmatprep.subr.mxu0 0.0
    %427 = vmatpush1.msra.mxu0 0.0
    %428 = vmatprep.mubr.f32.mxu0 0.0
    %429 = vmatmul.mubr.f32.gmra.mrb[0].mxu0 %v297
    %v430 = vpop.f32.mrb[0].mxu0
    %v431 = vadd.f32 %v352, %v430
    %v432 = vpop.f32.mrb[0].mxu0
    %v433 = vadd.f32 %v356, %v432
    %434 = vdwg.mxu0
    %435 = vmatprep.subr.mxu0 0.0
    %436 = vmatpush1.msra.mxu0 %v301
    %437 = vmatprep.subr.mxu0 0.0
    %438 = vmatpush1.msra.mxu0 %v304
    %439 = vmatprep.subr.mxu0 0.0
    %440 = vmatpush1.msra.mxu0 %v307
    %441 = vmatprep.subr.mxu0 0.0
    %442 = vmatpush1.msra.mxu0 %v310
    %443 = vmatprep.subr.mxu0 0.0
    %444 = vmatpush1.msra.mxu0 %v313
    %445 = vmatprep.subr.mxu0 0.0
    %446 = vmatpush1.msra.mxu0 %v316
    %447 = vmatprep.subr.mxu0 0.0
    %448 = vmatpush1.msra.mxu0 %v319
    %449 = vmatprep.subr.mxu0 0.0
    %450 = vmatpush1.msra.mxu0 %v322
    %451 = vmatprep.subr.mxu0 0.0
    %452 = vmatpush1.msra.mxu0 %v325
    %453 = vmatprep.subr.mxu0 0.0
    %454 = vmatpush1.msra.mxu0 %v328
    %455 = vmatprep.subr.mxu0 0.0
    %456 = vmatpush1.msra.mxu0 %v331
    %457 = vmatprep.subr.mxu0 0.0
    %458 = vmatpush1.msra.mxu0 %v334
    %459 = vmatprep.subr.mxu0 0.0
    %460 = vmatpush1.msra.mxu0 %v337
    %461 = vmatprep.subr.mxu0 0.0
    %462 = vmatpush1.msra.mxu0 %v340
    %463 = vmatprep.subr.mxu0 0.0
    %464 = vmatpush1.msra.mxu0 %v343
    %465 = vmatprep.subr.mxu0 0.0
    %466 = vmatpush1.msra.mxu0 %v346
    %467 = vmatprep.subr.mxu0 0.0
    %468 = vmatpush1.msra.mxu0 0.0
    %469 = vmatprep.subr.mxu0 0.0
    %470 = vmatpush1.msra.mxu0 0.0
    %471 = vmatprep.subr.mxu0 0.0
    %472 = vmatpush1.msra.mxu0 0.0
    %473 = vmatprep.subr.mxu0 0.0
    %474 = vmatpush1.msra.mxu0 0.0
    %475 = vmatprep.subr.mxu0 0.0
    %476 = vmatpush1.msra.mxu0 0.0
    %477 = vmatprep.subr.mxu0 0.0
    %478 = vmatpush1.msra.mxu0 0.0
    %479 = vmatprep.subr.mxu0 0.0
    %480 = vmatpush1.msra.mxu0 0.0
    %481 = vmatprep.subr.mxu0 0.0
    %482 = vmatpush1.msra.mxu0 0.0
    %483 = vmatprep.subr.mxu0 0.0
    %484 = vmatpush1.msra.mxu0 0.0
    %485 = vmatprep.subr.mxu0 0.0
    %486 = vmatpush1.msra.mxu0 0.0
    %487 = vmatprep.subr.mxu0 0.0
    %488 = vmatpush1.msra.mxu0 0.0
    %489 = vmatprep.subr.mxu0 0.0
    %490 = vmatpush1.msra.mxu0 0.0
    %491 = vmatprep.subr.mxu0 0.0
    %492 = vmatpush1.msra.mxu0 0.0
    %493 = vmatprep.subr.mxu0 0.0
    %494 = vmatpush1.msra.mxu0 0.0
    %495 = vmatprep.subr.mxu0 0.0
    %496 = vmatpush1.msra.mxu0 0.0
    %497 = vmatprep.subr.mxu0 0.0
    %498 = vmatpush1.msra.mxu0 0.0
    %499 = vmatprep.mubr.f32.mxu0 0.0
    %500 = vmatmul.mubr.f32.gmra.mrb[0].mxu0 %v297
    %v501 = vpop.f32.mrb[0].mxu0
    %v502 = vadd.f32 %v360, %v501
    %v503 = vpop.f32.mrb[0].mxu0
    %504 = vdwg.mxu0
    %v505 = vadd.f32 %v298, %v431
    %v506 = vxor.u32 %v505, 2147483648
    %v507 = vmul.f32 %v506, 1.442695
    %v508 = vpow.pop %v507
    %v509 = vadd.f32 %v508, 1.0
    %v510 = vrcp.pop %v509
    %v511 = vmul.f32 1.0, %v510
    %v513 = vrot.slane %v298, 1
    %v515 = vadd.f32 %v513, %v433
    %v516 = vxor.u32 %v515, 2147483648
    %v517 = vmul.f32 %v516, 1.442695
    %v518 = vpow.pop %v517
    %v519 = vadd.f32 %v518, 1.0
    %v520 = vrcp.pop %v519
    %v521 = vmul.f32 1.0, %v520
    %v522 = vmul.f32 %v511, %v502
    %v523 = vrot.slane %v298, 2
    %v525 = vadd.f32 %v523, %v522
    %v526 = vtanh.pop %v525
    %v527 = vsub.f32 1.0, %v521
    %v528 = vmul.f32 %v527, %v526
    %v529 = vmul.f32 %v521, %v297
    %v530 = vadd.f32 %v528, %v529
    %531 = vst [vmem:[#allocation3] sm:$0x1] %v530
    %s532 = scalar_lea.vmem [#allocation2], 1
    %v533 = vld [vmem:[%s532] ss:$8 sm:$0x7]
    %v534 = vld [vmem:[#allocation9] sm:$0xff]
    %v535 = vld [vmem:[#allocation9 + $0x8] sm:$0xff]
    %v536 = vld [vmem:[#allocation9 + $0x10] sm:$0xff]
    %v537 = vld [vmem:[#allocation9 + $0x18] sm:$0xff]
    %v538 = vld [vmem:[#allocation9 + $0x20] sm:$0xff]
    %v539 = vld [vmem:[#allocation9 + $0x28] sm:$0xff]
    %v540 = vld [vmem:[#allocation9 + $0x30] sm:$0xff]
    %v541 = vld [vmem:[#allocation9 + $0x38] sm:$0xff]
    %v542 = vld [vmem:[#allocation9 + $0x40] sm:$0xff]
    %v543 = vld [vmem:[#allocation9 + $0x48] sm:$0xff]
    %v544 = vld [vmem:[#allocation9 + $0x50] sm:$0xff]
    %v545 = vld [vmem:[#allocation9 + $0x58] sm:$0xff]
    %v546 = vld [vmem:[#allocation9 + $0x60] sm:$0xff]
    %v547 = vld [vmem:[#allocation9 + $0x68] sm:$0xff]
    %v548 = vld [vmem:[#allocation9 + $0x70] sm:$0xff]
    %v549 = vld [vmem:[#allocation9 + $0x78] sm:$0xff]
    %v550 = vld [vmem:[#allocation9 + $0x80] sm:$0xff]
    %v551 = vld [vmem:[#allocation9 + $0x88] sm:$0xff]
    %v552 = vld [vmem:[#allocation9 + $0x90] sm:$0xff]
    %v553 = vld [vmem:[#allocation9 + $0x98] sm:$0xff]
    %v554 = vld [vmem:[#allocation9 + $0xa0] sm:$0xff]
    %v555 = vld [vmem:[#allocation9 + $0xa8] sm:$0xff]
    %v556 = vld [vmem:[#allocation9 + $0xb0] sm:$0xff]
    %v557 = vld [vmem:[#allocation9 + $0xb8] sm:$0xff]
    %v558 = vld [vmem:[#allocation9 + $0xc0] sm:$0xff]
    %v559 = vld [vmem:[#allocation9 + $0xc8] sm:$0xff]
    %v560 = vld [vmem:[#allocation9 + $0xd0] sm:$0xff]
    %v561 = vld [vmem:[#allocation9 + $0xd8] sm:$0xff]
    %v562 = vld [vmem:[#allocation9 + $0xe0] sm:$0xff]
    %v563 = vld [vmem:[#allocation9 + $0xe8] sm:$0xff]
    %v564 = vld [vmem:[#allocation9 + $0xf0] sm:$0xff]
    %v565 = vld [vmem:[#allocation9 + $0xf8] sm:$0xff]
    %v566 = vld [vmem:[#allocation9 + $0x100] sm:$0xff]
    %v567 = vld [vmem:[#allocation9 + $0x108] sm:$0xff]
    %v568 = vld [vmem:[#allocation9 + $0x110] sm:$0xff]
    %v569 = vld [vmem:[#allocation9 + $0x118] sm:$0xff]
    %v570 = vld [vmem:[#allocation9 + $0x120] sm:$0xff]
    %v571 = vld [vmem:[#allocation9 + $0x128] sm:$0xff]
    %v572 = vld [vmem:[#allocation9 + $0x130] sm:$0xff]
    %v573 = vld [vmem:[#allocation9 + $0x138] sm:$0xff]
    %v574 = vld [vmem:[#allocation9 + $0x140] sm:$0xff]
    %v575 = vld [vmem:[#allocation9 + $0x148] sm:$0xff]
    %v576 = vld [vmem:[#allocation9 + $0x150] sm:$0xff]
    %v577 = vld [vmem:[#allocation9 + $0x158] sm:$0xff]
    %v578 = vld [vmem:[#allocation9 + $0x160] sm:$0xff]
    %v579 = vld [vmem:[#allocation9 + $0x168] sm:$0xff]
    %v580 = vld [vmem:[#allocation9 + $0x170] sm:$0xff]
    %v581 = vld [vmem:[#allocation9 + $0x178] sm:$0xff]
    %v582 = vld [vmem:[%s5] sm:$0x7]
    %v584 = vlaneseq
    %v585 = vshrl.u32 %v584, 7
    %v586 = vsub.s32 0, %v585
    %v587 = vrot.slane %v582, %v586
    %v588 = vlaneseq
    %v589 = vshrl.u32 %v588, 7
    %v590 = vsub.s32 1, %v589
    %v591 = vrot.slane %v582, %v590
    %v592 = vlaneseq
    %v593 = vshrl.u32 %v592, 7
    %v594 = vsub.s32 2, %v593
    %v595 = vrot.slane %v582, %v594
    %599 = vmatprep.subr.mxu0 %v535
    %600 = vmatpush1.msra.mxu0 %v534
    %601 = vmatprep.subr.mxu0 %v538
    %602 = vmatpush1.msra.mxu0 %v537
    %603 = vmatprep.subr.mxu0 %v541
    %604 = vmatpush1.msra.mxu0 %v540
    %605 = vmatprep.subr.mxu0 %v544
    %606 = vmatpush1.msra.mxu0 %v543
    %607 = vmatprep.subr.mxu0 %v547
    %608 = vmatpush1.msra.mxu0 %v546
    %609 = vmatprep.subr.mxu0 %v550
    %610 = vmatpush1.msra.mxu0 %v549
    %611 = vmatprep.subr.mxu0 %v553
    %612 = vmatpush1.msra.mxu0 %v552
    %613 = vmatprep.subr.mxu0 %v556
    %614 = vmatpush1.msra.mxu0 %v555
    %615 = vmatprep.subr.mxu0 %v559
    %616 = vmatpush1.msra.mxu0 %v558
    %617 = vmatprep.subr.mxu0 %v562
    %618 = vmatpush1.msra.mxu0 %v561
    %619 = vmatprep.subr.mxu0 %v565
    %620 = vmatpush1.msra.mxu0 %v564
    %621 = vmatprep.subr.mxu0 %v568
    %622 = vmatpush1.msra.mxu0 %v567
    %623 = vmatprep.subr.mxu0 %v571
    %624 = vmatpush1.msra.mxu0 %v570
    %625 = vmatprep.subr.mxu0 %v574
    %626 = vmatpush1.msra.mxu0 %v573
    %627 = vmatprep.subr.mxu0 %v577
    %628 = vmatpush1.msra.mxu0 %v576
    %629 = vmatprep.subr.mxu0 %v580
    %630 = vmatpush1.msra.mxu0 %v579
    %631 = vmatprep.subr.mxu0 0.0
    %632 = vmatpush1.msra.mxu0 0.0
    %633 = vmatprep.subr.mxu0 0.0
    %634 = vmatpush1.msra.mxu0 0.0
    %635 = vmatprep.subr.mxu0 0.0
    %636 = vmatpush1.msra.mxu0 0.0
    %637 = vmatprep.subr.mxu0 0.0
    %638 = vmatpush1.msra.mxu0 0.0
    %639 = vmatprep.subr.mxu0 0.0
    %640 = vmatpush1.msra.mxu0 0.0
    %641 = vmatprep.subr.mxu0 0.0
    %642 = vmatpush1.msra.mxu0 0.0
    %643 = vmatprep.subr.mxu0 0.0
    %644 = vmatpush1.msra.mxu0 0.0
    %645 = vmatprep.subr.mxu0 0.0
    %646 = vmatpush1.msra.mxu0 0.0
    %647 = vmatprep.subr.mxu0 0.0
    %648 = vmatpush1.msra.mxu0 0.0
    %649 = vmatprep.subr.mxu0 0.0
    %650 = vmatpush1.msra.mxu0 0.0
    %651 = vmatprep.subr.mxu0 0.0
    %652 = vmatpush1.msra.mxu0 0.0
    %653 = vmatprep.subr.mxu0 0.0
    %654 = vmatpush1.msra.mxu0 0.0
    %655 = vmatprep.subr.mxu0 0.0
    %656 = vmatpush1.msra.mxu0 0.0
    %657 = vmatprep.subr.mxu0 0.0
    %658 = vmatpush1.msra.mxu0 0.0
    %659 = vmatprep.subr.mxu0 0.0
    %660 = vmatpush1.msra.mxu0 0.0
    %661 = vmatprep.subr.mxu0 0.0
    %662 = vmatpush1.msra.mxu0 0.0
    %663 = vmatprep.mubr.f32.mxu0 0.0
    %664 = vmatmul.mubr.f32.gmra.mrb[0].mxu0 %v530
    %v665 = vpop.f32.mrb[0].mxu0
    %v666 = vadd.f32 %v587, %v665
    %v667 = vpop.f32.mrb[0].mxu0
    %v668 = vadd.f32 %v591, %v667
    %669 = vdwg.mxu0
    %670 = vmatprep.subr.mxu0 0.0
    %671 = vmatpush1.msra.mxu0 %v536
    %672 = vmatprep.subr.mxu0 0.0
    %673 = vmatpush1.msra.mxu0 %v539
    %674 = vmatprep.subr.mxu0 0.0
    %675 = vmatpush1.msra.mxu0 %v542
    %676 = vmatprep.subr.mxu0 0.0
    %677 = vmatpush1.msra.mxu0 %v545
    %678 = vmatprep.subr.mxu0 0.0
    %679 = vmatpush1.msra.mxu0 %v548
    %680 = vmatprep.subr.mxu0 0.0
    %681 = vmatpush1.msra.mxu0 %v551
    %682 = vmatprep.subr.mxu0 0.0
    %683 = vmatpush1.msra.mxu0 %v554
    %684 = vmatprep.subr.mxu0 0.0
    %685 = vmatpush1.msra.mxu0 %v557
    %686 = vmatprep.subr.mxu0 0.0
    %687 = vmatpush1.msra.mxu0 %v560
    %688 = vmatprep.subr.mxu0 0.0
    %689 = vmatpush1.msra.mxu0 %v563
    %690 = vmatprep.subr.mxu0 0.0
    %691 = vmatpush1.msra.mxu0 %v566
    %692 = vmatprep.subr.mxu0 0.0
    %693 = vmatpush1.msra.mxu0 %v569
    %694 = vmatprep.subr.mxu0 0.0
    %695 = vmatpush1.msra.mxu0 %v572
    %696 = vmatprep.subr.mxu0 0.0
    %697 = vmatpush1.msra.mxu0 %v575
    %698 = vmatprep.subr.mxu0 0.0
    %699 = vmatpush1.msra.mxu0 %v578
    %700 = vmatprep.subr.mxu0 0.0
    %701 = vmatpush1.msra.mxu0 %v581
    %702 = vmatprep.subr.mxu0 0.0
    %703 = vmatpush1.msra.mxu0 0.0
    %704 = vmatprep.subr.mxu0 0.0
    %705 = vmatpush1.msra.mxu0 0.0
    %706 = vmatprep.subr.mxu0 0.0
    %707 = vmatpush1.msra.mxu0 0.0
    %708 = vmatprep.subr.mxu0 0.0
    %709 = vmatpush1.msra.mxu0 0.0
    %710 = vmatprep.subr.mxu0 0.0
    %711 = vmatpush1.msra.mxu0 0.0
    %712 = vmatprep.subr.mxu0 0.0
    %713 = vmatpush1.msra.mxu0 0.0
    %714 = vmatprep.subr.mxu0 0.0
    %715 = vmatpush1.msra.mxu0 0.0
    %716 = vmatprep.subr.mxu0 0.0
    %717 = vmatpush1.msra.mxu0 0.0
    %718 = vmatprep.subr.mxu0 0.0
    %719 = vmatpush1.msra.mxu0 0.0
    %720 = vmatprep.subr.mxu0 0.0
    %721 = vmatpush1.msra.mxu0 0.0
    %722 = vmatprep.subr.mxu0 0.0
    %723 = vmatpush1.msra.mxu0 0.0
    %724 = vmatprep.subr.mxu0 0.0
    %725 = vmatpush1.msra.mxu0 0.0
    %726 = vmatprep.subr.mxu0 0.0
    %727 = vmatpush1.msra.mxu0 0.0
    %728 = vmatprep.subr.mxu0 0.0
    %729 = vmatpush1.msra.mxu0 0.0
    %730 = vmatprep.subr.mxu0 0.0
    %731 = vmatpush1.msra.mxu0 0.0
    %732 = vmatprep.subr.mxu0 0.0
    %733 = vmatpush1.msra.mxu0 0.0
    %734 = vmatprep.mubr.f32.mxu0 0.0
    %735 = vmatmul.mubr.f32.gmra.mrb[0].mxu0 %v530
    %v736 = vpop.f32.mrb[0].mxu0
    %v737 = vadd.f32 %v595, %v736
    %v738 = vpop.f32.mrb[0].mxu0
    %739 = vdwg.mxu0
    %v740 = vadd.f32 %v533, %v666
    %v741 = vxor.u32 %v740, 2147483648
    %v742 = vmul.f32 %v741, 1.442695
    %v743 = vpow.pop %v742
    %v744 = vadd.f32 %v743, 1.0
    %v745 = vrcp.pop %v744
    %v746 = vmul.f32 1.0, %v745
    %v748 = vrot.slane %v533, 1
    %v750 = vadd.f32 %v748, %v668
    %v751 = vxor.u32 %v750, 2147483648
    %v752 = vmul.f32 %v751, 1.442695
    %v753 = vpow.pop %v752
    %v754 = vadd.f32 %v753, 1.0
    %v755 = vrcp.pop %v754
    %v756 = vmul.f32 1.0, %v755
    %v757 = vmul.f32 %v746, %v737
    %v758 = vrot.slane %v533, 2
    %v760 = vadd.f32 %v758, %v757
    %v761 = vtanh.pop %v760
    %v762 = vsub.f32 1.0, %v756
    %v763 = vmul.f32 %v762, %v761
    %v764 = vmul.f32 %v756, %v530
    %v765 = vadd.f32 %v763, %v764
    %766 = vst [vmem:[#allocation3 + $0x1] sm:$0x1] %v765
    %s767 = scalar_lea.vmem [#allocation2], 2
    %v768 = vld [vmem:[%s767] ss:$8 sm:$0x7]
    %v769 = vld [vmem:[#allocation9] sm:$0xff]
    %v770 = vld [vmem:[#allocation9 + $0x8] sm:$0xff]
    %v771 = vld [vmem:[#allocation9 + $0x10] sm:$0xff]
    %v772 = vld [vmem:[#allocation9 + $0x18] sm:$0xff]
    %v773 = vld [vmem:[#allocation9 + $0x20] sm:$0xff]
    %v774 = vld [vmem:[#allocation9 + $0x28] sm:$0xff]
    %v775 = vld [vmem:[#allocation9 + $0x30] sm:$0xff]
    %v776 = vld [vmem:[#allocation9 + $0x38] sm:$0xff]
    %v777 = vld [vmem:[#allocation9 + $0x40] sm:$0xff]
    %v778 = vld [vmem:[#allocation9 + $0x48] sm:$0xff]
    %v779 = vld [vmem:[#allocation9 + $0x50] sm:$0xff]
    %v780 = vld [vmem:[#allocation9 + $0x58] sm:$0xff]
    %v781 = vld [vmem:[#allocation9 + $0x60] sm:$0xff]
    %v782 = vld [vmem:[#allocation9 + $0x68] sm:$0xff]
    %v783 = vld [vmem:[#allocation9 + $0x70] sm:$0xff]
    %v784 = vld [vmem:[#allocation9 + $0x78] sm:$0xff]
    %v785 = vld [vmem:[#allocation9 + $0x80] sm:$0xff]
    %v786 = vld [vmem:[#allocation9 + $0x88] sm:$0xff]
    %v787 = vld [vmem:[#allocation9 + $0x90] sm:$0xff]
    %v788 = vld [vmem:[#allocation9 + $0x98] sm:$0xff]
    %v789 = vld [vmem:[#allocation9 + $0xa0] sm:$0xff]
    %v790 = vld [vmem:[#allocation9 + $0xa8] sm:$0xff]
    %v791 = vld [vmem:[#allocation9 + $0xb0] sm:$0xff]
    %v792 = vld [vmem:[#allocation9 + $0xb8] sm:$0xff]
    %v793 = vld [vmem:[#allocation9 + $0xc0] sm:$0xff]
    %v794 = vld [vmem:[#allocation9 + $0xc8] sm:$0xff]
    %v795 = vld [vmem:[#allocation9 + $0xd0] sm:$0xff]
    %v796 = vld [vmem:[#allocation9 + $0xd8] sm:$0xff]
    %v797 = vld [vmem:[#allocation9 + $0xe0] sm:$0xff]
    %v798 = vld [vmem:[#allocation9 + $0xe8] sm:$0xff]
    %v799 = vld [vmem:[#allocation9 + $0xf0] sm:$0xff]
    %v800 = vld [vmem:[#allocation9 + $0xf8] sm:$0xff]
    %v801 = vld [vmem:[#allocation9 + $0x100] sm:$0xff]
    %v802 = vld [vmem:[#allocation9 + $0x108] sm:$0xff]
    %v803 = vld [vmem:[#allocation9 + $0x110] sm:$0xff]
    %v804 = vld [vmem:[#allocation9 + $0x118] sm:$0xff]
    %v805 = vld [vmem:[#allocation9 + $0x120] sm:$0xff]
    %v806 = vld [vmem:[#allocation9 + $0x128] sm:$0xff]
    %v807 = vld [vmem:[#allocation9 + $0x130] sm:$0xff]
    %v808 = vld [vmem:[#allocation9 + $0x138] sm:$0xff]
    %v809 = vld [vmem:[#allocation9 + $0x140] sm:$0xff]
    %v810 = vld [vmem:[#allocation9 + $0x148] sm:$0xff]
    %v811 = vld [vmem:[#allocation9 + $0x150] sm:$0xff]
    %v812 = vld [vmem:[#allocation9 + $0x158] sm:$0xff]
    %v813 = vld [vmem:[#allocation9 + $0x160] sm:$0xff]
    %v814 = vld [vmem:[#allocation9 + $0x168] sm:$0xff]
    %v815 = vld [vmem:[#allocation9 + $0x170] sm:$0xff]
    %v816 = vld [vmem:[#allocation9 + $0x178] sm:$0xff]
    %v817 = vld [vmem:[%s5] sm:$0x7]
    %v819 = vlaneseq
    %v820 = vshrl.u32 %v819, 7
    %v821 = vsub.s32 0, %v820
    %v822 = vrot.slane %v817, %v821
    %v823 = vlaneseq
    %v824 = vshrl.u32 %v823, 7
    %v825 = vsub.s32 1, %v824
    %v826 = vrot.slane %v817, %v825
    %v827 = vlaneseq
    %v828 = vshrl.u32 %v827, 7
    %v829 = vsub.s32 2, %v828
    %v830 = vrot.slane %v817, %v829
    %834 = vmatprep.subr.mxu0 %v770
    %835 = vmatpush1.msra.mxu0 %v769
    %836 = vmatprep.subr.mxu0 %v773
    %837 = vmatpush1.msra.mxu0 %v772
    %838 = vmatprep.subr.mxu0 %v776
    %839 = vmatpush1.msra.mxu0 %v775
    %840 = vmatprep.subr.mxu0 %v779
    %841 = vmatpush1.msra.mxu0 %v778
    %842 = vmatprep.subr.mxu0 %v782
    %843 = vmatpush1.msra.mxu0 %v781
    %844 = vmatprep.subr.mxu0 %v785
    %845 = vmatpush1.msra.mxu0 %v784
    %846 = vmatprep.subr.mxu0 %v788
    %847 = vmatpush1.msra.mxu0 %v787
    %848 = vmatprep.subr.mxu0 %v791
    %849 = vmatpush1.msra.mxu0 %v790
    %850 = vmatprep.subr.mxu0 %v794
    %851 = vmatpush1.msra.mxu0 %v793
    %852 = vmatprep.subr.mxu0 %v797
    %853 = vmatpush1.msra.mxu0 %v796
    %854 = vmatprep.subr.mxu0 %v800
    %855 = vmatpush1.msra.mxu0 %v799
    %856 = vmatprep.subr.mxu0 %v803
    %857 = vmatpush1.msra.mxu0 %v802
    %858 = vmatprep.subr.mxu0 %v806
    %859 = vmatpush1.msra.mxu0 %v805
    %860 = vmatprep.subr.mxu0 %v809
    %861 = vmatpush1.msra.mxu0 %v808
    %862 = vmatprep.subr.mxu0 %v812
    %863 = vmatpush1.msra.mxu0 %v811
    %864 = vmatprep.subr.mxu0 %v815
    %865 = vmatpush1.msra.mxu0 %v814
    %866 = vmatprep.subr.mxu0 0.0
    %867 = vmatpush1.msra.mxu0 0.0
    %868 = vmatprep.subr.mxu0 0.0
    %869 = vmatpush1.msra.mxu0 0.0
    %870 = vmatprep.subr.mxu0 0.0
    %871 = vmatpush1.msra.mxu0 0.0
    %872 = vmatprep.subr.mxu0 0.0
    %873 = vmatpush1.msra.mxu0 0.0
    %874 = vmatprep.subr.mxu0 0.0
    %875 = vmatpush1.msra.mxu0 0.0
    %876 = vmatprep.subr.mxu0 0.0
    %877 = vmatpush1.msra.mxu0 0.0
    %878 = vmatprep.subr.mxu0 0.0
    %879 = vmatpush1.msra.mxu0 0.0
    %880 = vmatprep.subr.mxu0 0.0
    %881 = vmatpush1.msra.mxu0 0.0
    %882 = vmatprep.subr.mxu0 0.0
    %883 = vmatpush1.msra.mxu0 0.0
    %884 = vmatprep.subr.mxu0 0.0
    %885 = vmatpush1.msra.mxu0 0.0
    %886 = vmatprep.subr.mxu0 0.0
    %887 = vmatpush1.msra.mxu0 0.0
    %888 = vmatprep.subr.mxu0 0.0
    %889 = vmatpush1.msra.mxu0 0.0
    %890 = vmatprep.subr.mxu0 0.0
    %891 = vmatpush1.msra.mxu0 0.0
    %892 = vmatprep.subr.mxu0 0.0
    %893 = vmatpush1.msra.mxu0 0.0
    %894 = vmatprep.subr.mxu0 0.0
    %895 = vmatpush1.msra.mxu0 0.0
    %896 = vmatprep.subr.mxu0 0.0
    %897 = vmatpush1.msra.mxu0 0.0
    %898 = vmatprep.mubr.f32.mxu0 0.0
    %899 = vmatmul.mubr.f32.gmra.mrb[0].mxu0 %v765
    %v900 = vpop.f32.mrb[0].mxu0
    %v901 = vadd.f32 %v822, %v900
    %v902 = vpop.f32.mrb[0].mxu0
    %v903 = vadd.f32 %v826, %v902
    %904 = vdwg.mxu0
    %905 = vmatprep.subr.mxu0 0.0
    %906 = vmatpush1.msra.mxu0 %v771
    %907 = vmatprep.subr.mxu0 0.0
    %908 = vmatpush1.msra.mxu0 %v774
    %909 = vmatprep.subr.mxu0 0.0
    %910 = vmatpush1.msra.mxu0 %v777
    %911 = vmatprep.subr.mxu0 0.0
    %912 = vmatpush1.msra.mxu0 %v780
    %913 = vmatprep.subr.mxu0 0.0
    %914 = vmatpush1.msra.mxu0 %v783
    %915 = vmatprep.subr.mxu0 0.0
    %916 = vmatpush1.msra.mxu0 %v786
    %917 = vmatprep.subr.mxu0 0.0
    %918 = vmatpush1.msra.mxu0 %v789
    %919 = vmatprep.subr.mxu0 0.0
    %920 = vmatpush1.msra.mxu0 %v792
    %921 = vmatprep.subr.mxu0 0.0
    %922 = vmatpush1.msra.mxu0 %v795
    %923 = vmatprep.subr.mxu0 0.0
    %924 = vmatpush1.msra.mxu0 %v798
    %925 = vmatprep.subr.mxu0 0.0
    %926 = vmatpush1.msra.mxu0 %v801
    %927 = vmatprep.subr.mxu0 0.0
    %928 = vmatpush1.msra.mxu0 %v804
    %929 = vmatprep.subr.mxu0 0.0
    %930 = vmatpush1.msra.mxu0 %v807
    %931 = vmatprep.subr.mxu0 0.0
    %932 = vmatpush1.msra.mxu0 %v810
    %933 = vmatprep.subr.mxu0 0.0
    %934 = vmatpush1.msra.mxu0 %v813
    %935 = vmatprep.subr.mxu0 0.0
    %936 = vmatpush1.msra.mxu0 %v816
    %937 = vmatprep.subr.mxu0 0.0
    %938 = vmatpush1.msra.mxu0 0.0
    %939 = vmatprep.subr.mxu0 0.0
    %940 = vmatpush1.msra.mxu0 0.0
    %941 = vmatprep.subr.mxu0 0.0
    %942 = vmatpush1.msra.mxu0 0.0
    %943 = vmatprep.subr.mxu0 0.0
    %944 = vmatpush1.msra.mxu0 0.0
    %945 = vmatprep.subr.mxu0 0.0
    %946 = vmatpush1.msra.mxu0 0.0
    %947 = vmatprep.subr.mxu0 0.0
    %948 = vmatpush1.msra.mxu0 0.0
    %949 = vmatprep.subr.mxu0 0.0
    %950 = vmatpush1.msra.mxu0 0.0
    %951 = vmatprep.subr.mxu0 0.0
    %952 = vmatpush1.msra.mxu0 0.0
    %953 = vmatprep.subr.mxu0 0.0
    %954 = vmatpush1.msra.mxu0 0.0
    %955 = vmatprep.subr.mxu0 0.0
    %956 = vmatpush1.msra.mxu0 0.0
    %957 = vmatprep.subr.mxu0 0.0
    %958 = vmatpush1.msra.mxu0 0.0
    %959 = vmatprep.subr.mxu0 0.0
    %960 = vmatpush1.msra.mxu0 0.0
    %961 = vmatprep.subr.mxu0 0.0
    %962 = vmatpush1.msra.mxu0 0.0
    %963 = vmatprep.subr.mxu0 0.0
    %964 = vmatpush1.msra.mxu0 0.0
    %965 = vmatprep.subr.mxu0 0.0
    %966 = vmatpush1.msra.mxu0 0.0
    %967 = vmatprep.subr.mxu0 0.0
    %968 = vmatpush1.msra.mxu0 0.0
    %969 = vmatprep.mubr.f32.mxu0 0.0
    %970 = vmatmul.mubr.f32.gmra.mrb[0].mxu0 %v765
    %v971 = vpop.f32.mrb[0].mxu0
    %v972 = vadd.f32 %v830, %v971
    %v973 = vpop.f32.mrb[0].mxu0
    %974 = vdwg.mxu0
    %v975 = vadd.f32 %v768, %v901
    %v976 = vxor.u32 %v975, 2147483648
    %v977 = vmul.f32 %v976, 1.442695
    %v978 = vpow.pop %v977
    %v979 = vadd.f32 %v978, 1.0
    %v980 = vrcp.pop %v979
    %v981 = vmul.f32 1.0, %v980
    %v983 = vrot.slane %v768, 1
    %v985 = vadd.f32 %v983, %v903
    %v986 = vxor.u32 %v985, 2147483648
    %v987 = vmul.f32 %v986, 1.442695
    %v988 = vpow.pop %v987
    %v989 = vadd.f32 %v988, 1.0
    %v990 = vrcp.pop %v989
    %v991 = vmul.f32 1.0, %v990
    %v992 = vmul.f32 %v981, %v972
    %v993 = vrot.slane %v768, 2
    %v995 = vadd.f32 %v993, %v992
    %v996 = vtanh.pop %v995
    %v997 = vsub.f32 1.0, %v991
    %v998 = vmul.f32 %v997, %v996
    %v999 = vmul.f32 %v991, %v765
    %v1000 = vadd.f32 %v998, %v999
    %1001 = vst [vmem:[#allocation3 + $0x2] sm:$0x1] %v1000
    %s1002 = scalar_lea.vmem [#allocation2], 3
    %v1003 = vld [vmem:[%s1002] ss:$8 sm:$0x7]
    %v1004 = vld [vmem:[#allocation9] sm:$0xff]
    %v1005 = vld [vmem:[#allocation9 + $0x8] sm:$0xff]
    %v1006 = vld [vmem:[#allocation9 + $0x10] sm:$0xff]
    %v1007 = vld [vmem:[#allocation9 + $0x18] sm:$0xff]
    %v1008 = vld [vmem:[#allocation9 + $0x20] sm:$0xff]
    %v1009 = vld [vmem:[#allocation9 + $0x28] sm:$0xff]
    %v1010 = vld [vmem:[#allocation9 + $0x30] sm:$0xff]
    %v1011 = vld [vmem:[#allocation9 + $0x38] sm:$0xff]
    %v1012 = vld [vmem:[#allocation9 + $0x40] sm:$0xff]
    %v1013 = vld [vmem:[#allocation9 + $0x48] sm:$0xff]
    %v1014 = vld [vmem:[#allocation9 + $0x50] sm:$0xff]
    %v1015 = vld [vmem:[#allocation9 + $0x58] sm:$0xff]
    %v1016 = vld [vmem:[#allocation9 + $0x60] sm:$0xff]
    %v1017 = vld [vmem:[#allocation9 + $0x68] sm:$0xff]
    %v1018 = vld [vmem:[#allocation9 + $0x70] sm:$0xff]
    %v1019 = vld [vmem:[#allocation9 + $0x78] sm:$0xff]
    %v1020 = vld [vmem:[#allocation9 + $0x80] sm:$0xff]
    %v1021 = vld [vmem:[#allocation9 + $0x88] sm:$0xff]
    %v1022 = vld [vmem:[#allocation9 + $0x90] sm:$0xff]
    %v1023 = vld [vmem:[#allocation9 + $0x98] sm:$0xff]
    %v1024 = vld [vmem:[#allocation9 + $0xa0] sm:$0xff]
    %v1025 = vld [vmem:[#allocation9 + $0xa8] sm:$0xff]
    %v1026 = vld [vmem:[#allocation9 + $0xb0] sm:$0xff]
    %v1027 = vld [vmem:[#allocation9 + $0xb8] sm:$0xff]
    %v1028 = vld [vmem:[#allocation9 + $0xc0] sm:$0xff]
    %v1029 = vld [vmem:[#allocation9 + $0xc8] sm:$0xff]
    %v1030 = vld [vmem:[#allocation9 + $0xd0] sm:$0xff]
    %v1031 = vld [vmem:[#allocation9 + $0xd8] sm:$0xff]
    %v1032 = vld [vmem:[#allocation9 + $0xe0] sm:$0xff]
    %v1033 = vld [vmem:[#allocation9 + $0xe8] sm:$0xff]
    %v1034 = vld [vmem:[#allocation9 + $0xf0] sm:$0xff]
    %v1035 = vld [vmem:[#allocation9 + $0xf8] sm:$0xff]
    %v1036 = vld [vmem:[#allocation9 + $0x100] sm:$0xff]
    %v1037 = vld [vmem:[#allocation9 + $0x108] sm:$0xff]
    %v1038 = vld [vmem:[#allocation9 + $0x110] sm:$0xff]
    %v1039 = vld [vmem:[#allocation9 + $0x118] sm:$0xff]
    %v1040 = vld [vmem:[#allocation9 + $0x120] sm:$0xff]
    %v1041 = vld [vmem:[#allocation9 + $0x128] sm:$0xff]
    %v1042 = vld [vmem:[#allocation9 + $0x130] sm:$0xff]
    %v1043 = vld [vmem:[#allocation9 + $0x138] sm:$0xff]
    %v1044 = vld [vmem:[#allocation9 + $0x140] sm:$0xff]
    %v1045 = vld [vmem:[#allocation9 + $0x148] sm:$0xff]
    %v1046 = vld [vmem:[#allocation9 + $0x150] sm:$0xff]
    %v1047 = vld [vmem:[#allocation9 + $0x158] sm:$0xff]
    %v1048 = vld [vmem:[#allocation9 + $0x160] sm:$0xff]
    %v1049 = vld [vmem:[#allocation9 + $0x168] sm:$0xff]
    %v1050 = vld [vmem:[#allocation9 + $0x170] sm:$0xff]
    %v1051 = vld [vmem:[#allocation9 + $0x178] sm:$0xff]
    %v1052 = vld [vmem:[%s5] sm:$0x7]
    %v1054 = vlaneseq
    %v1055 = vshrl.u32 %v1054, 7
    %v1056 = vsub.s32 0, %v1055
    %v1057 = vrot.slane %v1052, %v1056
    %v1058 = vlaneseq
    %v1059 = vshrl.u32 %v1058, 7
    %v1060 = vsub.s32 1, %v1059
    %v1061 = vrot.slane %v1052, %v1060
    %v1062 = vlaneseq
    %v1063 = vshrl.u32 %v1062, 7
    %v1064 = vsub.s32 2, %v1063
    %v1065 = vrot.slane %v1052, %v1064
    %1069 = vmatprep.subr.mxu0 %v1005
    %1070 = vmatpush1.msra.mxu0 %v1004
    %1071 = vmatprep.subr.mxu0 %v1008
    %1072 = vmatpush1.msra.mxu0 %v1007
    %1073 = vmatprep.subr.mxu0 %v1011
    %1074 = vmatpush1.msra.mxu0 %v1010
    %1075 = vmatprep.subr.mxu0 %v1014
    %1076 = vmatpush1.msra.mxu0 %v1013
    %1077 = vmatprep.subr.mxu0 %v1017
    %1078 = vmatpush1.msra.mxu0 %v1016
    %1079 = vmatprep.subr.mxu0 %v1020
    %1080 = vmatpush1.msra.mxu0 %v1019
    %1081 = vmatprep.subr.mxu0 %v1023
    %1082 = vmatpush1.msra.mxu0 %v1022
    %1083 = vmatprep.subr.mxu0 %v1026
    %1084 = vmatpush1.msra.mxu0 %v1025
    %1085 = vmatprep.subr.mxu0 %v1029
    %1086 = vmatpush1.msra.mxu0 %v1028
    %1087 = vmatprep.subr.mxu0 %v1032
    %1088 = vmatpush1.msra.mxu0 %v1031
    %1089 = vmatprep.subr.mxu0 %v1035
    %1090 = vmatpush1.msra.mxu0 %v1034
    %1091 = vmatprep.subr.mxu0 %v1038
    %1092 = vmatpush1.msra.mxu0 %v1037
    %1093 = vmatprep.subr.mxu0 %v1041
    %1094 = vmatpush1.msra.mxu0 %v1040
    %1095 = vmatprep.subr.mxu0 %v1044
    %1096 = vmatpush1.msra.mxu0 %v1043
    %1097 = vmatprep.subr.mxu0 %v1047
    %1098 = vmatpush1.msra.mxu0 %v1046
    %1099 = vmatprep.subr.mxu0 %v1050
    %1100 = vmatpush1.msra.mxu0 %v1049
    %1101 = vmatprep.subr.mxu0 0.0
    %1102 = vmatpush1.msra.mxu0 0.0
    %1103 = vmatprep.subr.mxu0 0.0
    %1104 = vmatpush1.msra.mxu0 0.0
    %1105 = vmatprep.subr.mxu0 0.0
    %1106 = vmatpush1.msra.mxu0 0.0
    %1107 = vmatprep.subr.mxu0 0.0
    %1108 = vmatpush1.msra.mxu0 0.0
    %1109 = vmatprep.subr.mxu0 0.0
    %1110 = vmatpush1.msra.mxu0 0.0
    %1111 = vmatprep.subr.mxu0 0.0
    %1112 = vmatpush1.msra.mxu0 0.0
    %1113 = vmatprep.subr.mxu0 0.0
    %1114 = vmatpush1.msra.mxu0 0.0
    %1115 = vmatprep.subr.mxu0 0.0
    %1116 = vmatpush1.msra.mxu0 0.0
    %1117 = vmatprep.subr.mxu0 0.0
    %1118 = vmatpush1.msra.mxu0 0.0
    %1119 = vmatprep.subr.mxu0 0.0
    %1120 = vmatpush1.msra.mxu0 0.0
    %1121 = vmatprep.subr.mxu0 0.0
    %1122 = vmatpush1.msra.mxu0 0.0
    %1123 = vmatprep.subr.mxu0 0.0
    %1124 = vmatpush1.msra.mxu0 0.0
    %1125 = vmatprep.subr.mxu0 0.0
    %1126 = vmatpush1.msra.mxu0 0.0
    %1127 = vmatprep.subr.mxu0 0.0
    %1128 = vmatpush1.msra.mxu0 0.0
    %1129 = vmatprep.subr.mxu0 0.0
    %1130 = vmatpush1.msra.mxu0 0.0
    %1131 = vmatprep.subr.mxu0 0.0
    %1132 = vmatpush1.msra.mxu0 0.0
    %1133 = vmatprep.mubr.f32.mxu0 0.0
    %1134 = vmatmul.mubr.f32.gmra.mrb[0].mxu0 %v1000
    %v1135 = vpop.f32.mrb[0].mxu0
    %v1136 = vadd.f32 %v1057, %v1135
    %v1137 = vpop.f32.mrb[0].mxu0
    %v1138 = vadd.f32 %v1061, %v1137
    %1139 = vdwg.mxu0
    %1140 = vmatprep.subr.mxu0 0.0
    %1141 = vmatpush1.msra.mxu0 %v1006
    %1142 = vmatprep.subr.mxu0 0.0
    %1143 = vmatpush1.msra.mxu0 %v1009
    %1144 = vmatprep.subr.mxu0 0.0
    %1145 = vmatpush1.msra.mxu0 %v1012
    %1146 = vmatprep.subr.mxu0 0.0
    %1147 = vmatpush1.msra.mxu0 %v1015
    %1148 = vmatprep.subr.mxu0 0.0
    %1149 = vmatpush1.msra.mxu0 %v1018
    %1150 = vmatprep.subr.mxu0 0.0
    %1151 = vmatpush1.msra.mxu0 %v1021
    %1152 = vmatprep.subr.mxu0 0.0
    %1153 = vmatpush1.msra.mxu0 %v1024
    %1154 = vmatprep.subr.mxu0 0.0
    %1155 = vmatpush1.msra.mxu0 %v1027
    %1156 = vmatprep.subr.mxu0 0.0
    %1157 = vmatpush1.msra.mxu0 %v1030
    %1158 = vmatprep.subr.mxu0 0.0
    %1159 = vmatpush1.msra.mxu0 %v1033
    %1160 = vmatprep.subr.mxu0 0.0
    %1161 = vmatpush1.msra.mxu0 %v1036
    %1162 = vmatprep.subr.mxu0 0.0
    %1163 = vmatpush1.msra.mxu0 %v1039
    %1164 = vmatprep.subr.mxu0 0.0
    %1165 = vmatpush1.msra.mxu0 %v1042
    %1166 = vmatprep.subr.mxu0 0.0
    %1167 = vmatpush1.msra.mxu0 %v1045
    %1168 = vmatprep.subr.mxu0 0.0
    %1169 = vmatpush1.msra.mxu0 %v1048
    %1170 = vmatprep.subr.mxu0 0.0
    %1171 = vmatpush1.msra.mxu0 %v1051
    %1172 = vmatprep.subr.mxu0 0.0
    %1173 = vmatpush1.msra.mxu0 0.0
    %1174 = vmatprep.subr.mxu0 0.0
    %1175 = vmatpush1.msra.mxu0 0.0
    %1176 = vmatprep.subr.mxu0 0.0
    %1177 = vmatpush1.msra.mxu0 0.0
    %1178 = vmatprep.subr.mxu0 0.0
    %1179 = vmatpush1.msra.mxu0 0.0
    %1180 = vmatprep.subr.mxu0 0.0
    %1181 = vmatpush1.msra.mxu0 0.0
    %1182 = vmatprep.subr.mxu0 0.0
    %1183 = vmatpush1.msra.mxu0 0.0
    %1184 = vmatprep.subr.mxu0 0.0
    %1185 = vmatpush1.msra.mxu0 0.0
    %1186 = vmatprep.subr.mxu0 0.0
    %1187 = vmatpush1.msra.mxu0 0.0
    %1188 = vmatprep.subr.mxu0 0.0
    %1189 = vmatpush1.msra.mxu0 0.0
    %1190 = vmatprep.subr.mxu0 0.0
    %1191 = vmatpush1.msra.mxu0 0.0
    %1192 = vmatprep.subr.mxu0 0.0
    %1193 = vmatpush1.msra.mxu0 0.0
    %1194 = vmatprep.subr.mxu0 0.0
    %1195 = vmatpush1.msra.mxu0 0.0
    %1196 = vmatprep.subr.mxu0 0.0
    %1197 = vmatpush1.msra.mxu0 0.0
    %1198 = vmatprep.subr.mxu0 0.0
    %1199 = vmatpush1.msra.mxu0 0.0
    %1200 = vmatprep.subr.mxu0 0.0
    %1201 = vmatpush1.msra.mxu0 0.0
    %1202 = vmatprep.subr.mxu0 0.0
    %1203 = vmatpush1.msra.mxu0 0.0
    %1204 = vmatprep.mubr.f32.mxu0 0.0
    %1205 = vmatmul.mubr.f32.gmra.mrb[0].mxu0 %v1000
    %v1206 = vpop.f32.mrb[0].mxu0
    %v1207 = vadd.f32 %v1065, %v1206
    %v1208 = vpop.f32.mrb[0].mxu0
    %1209 = vdwg.mxu0
    %v1210 = vadd.f32 %v1003, %v1136
    %v1211 = vxor.u32 %v1210, 2147483648
    %v1212 = vmul.f32 %v1211, 1.442695
    %v1213 = vpow.pop %v1212
    %v1214 = vadd.f32 %v1213, 1.0
    %v1215 = vrcp.pop %v1214
    %v1216 = vmul.f32 1.0, %v1215
    %v1218 = vrot.slane %v1003, 1
    %v1220 = vadd.f32 %v1218, %v1138
    %v1221 = vxor.u32 %v1220, 2147483648
    %v1222 = vmul.f32 %v1221, 1.442695
    %v1223 = vpow.pop %v1222
    %v1224 = vadd.f32 %v1223, 1.0
    %v1225 = vrcp.pop %v1224
    %v1226 = vmul.f32 1.0, %v1225
    %v1227 = vmul.f32 %v1216, %v1207
    %v1228 = vrot.slane %v1003, 2
    %v1230 = vadd.f32 %v1228, %v1227
    %v1231 = vtanh.pop %v1230
    %v1232 = vsub.f32 1.0, %v1226
    %v1233 = vmul.f32 %v1232, %v1231
    %v1234 = vmul.f32 %v1226, %v1000
    %v1235 = vadd.f32 %v1233, %v1234
    %1236 = vst [vmem:[#allocation3 + $0x3] sm:$0x1] %v1235
    %s1237 = scalar_lea.vmem [#allocation2], 4
    %v1238 = vld [vmem:[%s1237] ss:$8 sm:$0x7]
    %v1239 = vld [vmem:[#allocation9] sm:$0xff]
    %v1240 = vld [vmem:[#allocation9 + $0x8] sm:$0xff]
    %v1241 = vld [vmem:[#allocation9 + $0x10] sm:$0xff]
    %v1242 = vld [vmem:[#allocation9 + $0x18] sm:$0xff]
    %v1243 = vld [vmem:[#allocation9 + $0x20] sm:$0xff]
    %v1244 = vld [vmem:[#allocation9 + $0x28] sm:$0xff]
    %v1245 = vld [vmem:[#allocation9 + $0x30] sm:$0xff]
    %v1246 = vld [vmem:[#allocation9 + $0x38] sm:$0xff]
    %v1247 = vld [vmem:[#allocation9 + $0x40] sm:$0xff]
    %v1248 = vld [vmem:[#allocation9 + $0x48] sm:$0xff]
    %v1249 = vld [vmem:[#allocation9 + $0x50] sm:$0xff]
    %v1250 = vld [vmem:[#allocation9 + $0x58] sm:$0xff]
    %v1251 = vld [vmem:[#allocation9 + $0x60] sm:$0xff]
    %v1252 = vld [vmem:[#allocation9 + $0x68] sm:$0xff]
    %v1253 = vld [vmem:[#allocation9 + $0x70] sm:$0xff]
    %v1254 = vld [vmem:[#allocation9 + $0x78] sm:$0xff]
    %v1255 = vld [vmem:[#allocation9 + $0x80] sm:$0xff]
    %v1256 = vld [vmem:[#allocation9 + $0x88] sm:$0xff]
    %v1257 = vld [vmem:[#allocation9 + $0x90] sm:$0xff]
    %v1258 = vld [vmem:[#allocation9 + $0x98] sm:$0xff]
    %v1259 = vld [vmem:[#allocation9 + $0xa0] sm:$0xff]
    %v1260 = vld [vmem:[#allocation9 + $0xa8] sm:$0xff]
    %v1261 = vld [vmem:[#allocation9 + $0xb0] sm:$0xff]
    %v1262 = vld [vmem:[#allocation9 + $0xb8] sm:$0xff]
    %v1263 = vld [vmem:[#allocation9 + $0xc0] sm:$0xff]
    %v1264 = vld [vmem:[#allocation9 + $0xc8] sm:$0xff]
    %v1265 = vld [vmem:[#allocation9 + $0xd0] sm:$0xff]
    %v1266 = vld [vmem:[#allocation9 + $0xd8] sm:$0xff]
    %v1267 = vld [vmem:[#allocation9 + $0xe0] sm:$0xff]
    %v1268 = vld [vmem:[#allocation9 + $0xe8] sm:$0xff]
    %v1269 = vld [vmem:[#allocation9 + $0xf0] sm:$0xff]
    %v1270 = vld [vmem:[#allocation9 + $0xf8] sm:$0xff]
    %v1271 = vld [vmem:[#allocation9 + $0x100] sm:$0xff]
    %v1272 = vld [vmem:[#allocation9 + $0x108] sm:$0xff]
    %v1273 = vld [vmem:[#allocation9 + $0x110] sm:$0xff]
    %v1274 = vld [vmem:[#allocation9 + $0x118] sm:$0xff]
    %v1275 = vld [vmem:[#allocation9 + $0x120] sm:$0xff]
    %v1276 = vld [vmem:[#allocation9 + $0x128] sm:$0xff]
    %v1277 = vld [vmem:[#allocation9 + $0x130] sm:$0xff]
    %v1278 = vld [vmem:[#allocation9 + $0x138] sm:$0xff]
    %v1279 = vld [vmem:[#allocation9 + $0x140] sm:$0xff]
    %v1280 = vld [vmem:[#allocation9 + $0x148] sm:$0xff]
    %v1281 = vld [vmem:[#allocation9 + $0x150] sm:$0xff]
    %v1282 = vld [vmem:[#allocation9 + $0x158] sm:$0xff]
    %v1283 = vld [vmem:[#allocation9 + $0x160] sm:$0xff]
    %v1284 = vld [vmem:[#allocation9 + $0x168] sm:$0xff]
    %v1285 = vld [vmem:[#allocation9 + $0x170] sm:$0xff]
    %v1286 = vld [vmem:[#allocation9 + $0x178] sm:$0xff]
    %v1287 = vld [vmem:[%s5] sm:$0x7]
    %v1289 = vlaneseq
    %v1290 = vshrl.u32 %v1289, 7
    %v1291 = vsub.s32 0, %v1290
    %v1292 = vrot.slane %v1287, %v1291
    %v1293 = vlaneseq
    %v1294 = vshrl.u32 %v1293, 7
    %v1295 = vsub.s32 1, %v1294
    %v1296 = vrot.slane %v1287, %v1295
    %v1297 = vlaneseq
    %v1298 = vshrl.u32 %v1297, 7
    %v1299 = vsub.s32 2, %v1298
    %v1300 = vrot.slane %v1287, %v1299
    %1304 = vmatprep.subr.mxu0 %v1240
    %1305 = vmatpush1.msra.mxu0 %v1239
    %1306 = vmatprep.subr.mxu0 %v1243
    %1307 = vmatpush1.msra.mxu0 %v1242
    %1308 = vmatprep.subr.mxu0 %v1246
    %1309 = vmatpush1.msra.mxu0 %v1245
    %1310 = vmatprep.subr.mxu0 %v1249
    %1311 = vmatpush1.msra.mxu0 %v1248
    %1312 = vmatprep.subr.mxu0 %v1252
    %1313 = vmatpush1.msra.mxu0 %v1251
    %1314 = vmatprep.subr.mxu0 %v1255
    %1315 = vmatpush1.msra.mxu0 %v1254
    %1316 = vmatprep.subr.mxu0 %v1258
    %1317 = vmatpush1.msra.mxu0 %v1257
    %1318 = vmatprep.subr.mxu0 %v1261
    %1319 = vmatpush1.msra.mxu0 %v1260
    %1320 = vmatprep.subr.mxu0 %v1264
    %1321 = vmatpush1.msra.mxu0 %v1263
    %1322 = vmatprep.subr.mxu0 %v1267
    %1323 = vmatpush1.msra.mxu0 %v1266
    %1324 = vmatprep.subr.mxu0 %v1270
    %1325 = vmatpush1.msra.mxu0 %v1269
    %1326 = vmatprep.subr.mxu0 %v1273
    %1327 = vmatpush1.msra.mxu0 %v1272
    %1328 = vmatprep.subr.mxu0 %v1276
    %1329 = vmatpush1.msra.mxu0 %v1275
    %1330 = vmatprep.subr.mxu0 %v1279
    %1331 = vmatpush1.msra.mxu0 %v1278
    %1332 = vmatprep.subr.mxu0 %v1282
    %1333 = vmatpush1.msra.mxu0 %v1281
    %1334 = vmatprep.subr.mxu0 %v1285
    %1335 = vmatpush1.msra.mxu0 %v1284
    %1336 = vmatprep.subr.mxu0 0.0
    %1337 = vmatpush1.msra.mxu0 0.0
    %1338 = vmatprep.subr.mxu0 0.0
    %1339 = vmatpush1.msra.mxu0 0.0
    %1340 = vmatprep.subr.mxu0 0.0
    %1341 = vmatpush1.msra.mxu0 0.0
    %1342 = vmatprep.subr.mxu0 0.0
    %1343 = vmatpush1.msra.mxu0 0.0
    %1344 = vmatprep.subr.mxu0 0.0
    %1345 = vmatpush1.msra.mxu0 0.0
    %1346 = vmatprep.subr.mxu0 0.0
    %1347 = vmatpush1.msra.mxu0 0.0
    %1348 = vmatprep.subr.mxu0 0.0
    %1349 = vmatpush1.msra.mxu0 0.0
    %1350 = vmatprep.subr.mxu0 0.0
    %1351 = vmatpush1.msra.mxu0 0.0
    %1352 = vmatprep.subr.mxu0 0.0
    %1353 = vmatpush1.msra.mxu0 0.0
    %1354 = vmatprep.subr.mxu0 0.0
    %1355 = vmatpush1.msra.mxu0 0.0
    %1356 = vmatprep.subr.mxu0 0.0
    %1357 = vmatpush1.msra.mxu0 0.0
    %1358 = vmatprep.subr.mxu0 0.0
    %1359 = vmatpush1.msra.mxu0 0.0
    %1360 = vmatprep.subr.mxu0 0.0
    %1361 = vmatpush1.msra.mxu0 0.0
    %1362 = vmatprep.subr.mxu0 0.0
    %1363 = vmatpush1.msra.mxu0 0.0
    %1364 = vmatprep.subr.mxu0 0.0
    %1365 = vmatpush1.msra.mxu0 0.0
    %1366 = vmatprep.subr.mxu0 0.0
    %1367 = vmatpush1.msra.mxu0 0.0
    %1368 = vmatprep.mubr.f32.mxu0 0.0
    %1369 = vmatmul.mubr.f32.gmra.mrb[0].mxu0 %v1235
    %v1370 = vpop.f32.mrb[0].mxu0
    %v1371 = vadd.f32 %v1292, %v1370
    %v1372 = vpop.f32.mrb[0].mxu0
    %v1373 = vadd.f32 %v1296, %v1372
    %1374 = vdwg.mxu0
    %1375 = vmatprep.subr.mxu0 0.0
    %1376 = vmatpush1.msra.mxu0 %v1241
    %1377 = vmatprep.subr.mxu0 0.0
    %1378 = vmatpush1.msra.mxu0 %v1244
    %1379 = vmatprep.subr.mxu0 0.0
    %1380 = vmatpush1.msra.mxu0 %v1247
    %1381 = vmatprep.subr.mxu0 0.0
    %1382 = vmatpush1.msra.mxu0 %v1250
    %1383 = vmatprep.subr.mxu0 0.0
    %1384 = vmatpush1.msra.mxu0 %v1253
    %1385 = vmatprep.subr.mxu0 0.0
    %1386 = vmatpush1.msra.mxu0 %v1256
    %1387 = vmatprep.subr.mxu0 0.0
    %1388 = vmatpush1.msra.mxu0 %v1259
    %1389 = vmatprep.subr.mxu0 0.0
    %1390 = vmatpush1.msra.mxu0 %v1262
    %1391 = vmatprep.subr.mxu0 0.0
    %1392 = vmatpush1.msra.mxu0 %v1265
    %1393 = vmatprep.subr.mxu0 0.0
    %1394 = vmatpush1.msra.mxu0 %v1268
    %1395 = vmatprep.subr.mxu0 0.0
    %1396 = vmatpush1.msra.mxu0 %v1271
    %1397 = vmatprep.subr.mxu0 0.0
    %1398 = vmatpush1.msra.mxu0 %v1274
    %1399 = vmatprep.subr.mxu0 0.0
    %1400 = vmatpush1.msra.mxu0 %v1277
    %1401 = vmatprep.subr.mxu0 0.0
    %1402 = vmatpush1.msra.mxu0 %v1280
    %1403 = vmatprep.subr.mxu0 0.0
    %1404 = vmatpush1.msra.mxu0 %v1283
    %1405 = vmatprep.subr.mxu0 0.0
    %1406 = vmatpush1.msra.mxu0 %v1286
    %1407 = vmatprep.subr.mxu0 0.0
    %1408 = vmatpush1.msra.mxu0 0.0
    %1409 = vmatprep.subr.mxu0 0.0
    %1410 = vmatpush1.msra.mxu0 0.0
    %1411 = vmatprep.subr.mxu0 0.0
    %1412 = vmatpush1.msra.mxu0 0.0
    %1413 = vmatprep.subr.mxu0 0.0
    %1414 = vmatpush1.msra.mxu0 0.0
    %1415 = vmatprep.subr.mxu0 0.0
    %1416 = vmatpush1.msra.mxu0 0.0
    %1417 = vmatprep.subr.mxu0 0.0
    %1418 = vmatpush1.msra.mxu0 0.0
    %1419 = vmatprep.subr.mxu0 0.0
    %1420 = vmatpush1.msra.mxu0 0.0
    %1421 = vmatprep.subr.mxu0 0.0
    %1422 = vmatpush1.msra.mxu0 0.0
    %1423 = vmatprep.subr.mxu0 0.0
    %1424 = vmatpush1.msra.mxu0 0.0
    %1425 = vmatprep.subr.mxu0 0.0
    %1426 = vmatpush1.msra.mxu0 0.0
    %1427 = vmatprep.subr.mxu0 0.0
    %1428 = vmatpush1.msra.mxu0 0.0
    %1429 = vmatprep.subr.mxu0 0.0
    %1430 = vmatpush1.msra.mxu0 0.0
    %1431 = vmatprep.subr.mxu0 0.0
    %1432 = vmatpush1.msra.mxu0 0.0
    %1433 = vmatprep.subr.mxu0 0.0
    %1434 = vmatpush1.msra.mxu0 0.0
    %1435 = vmatprep.subr.mxu0 0.0
    %1436 = vmatpush1.msra.mxu0 0.0
    %1437 = vmatprep.subr.mxu0 0.0
    %1438 = vmatpush1.msra.mxu0 0.0
    %1439 = vmatprep.mubr.f32.mxu0 0.0
    %1440 = vmatmul.mubr.f32.gmra.mrb[0].mxu0 %v1235
    %v1441 = vpop.f32.mrb[0].mxu0
    %v1442 = vadd.f32 %v1300, %v1441
    %v1443 = vpop.f32.mrb[0].mxu0
    %1444 = vdwg.mxu0
    %v1445 = vadd.f32 %v1238, %v1371
    %v1446 = vxor.u32 %v1445, 2147483648
    %v1447 = vmul.f32 %v1446, 1.442695
    %v1448 = vpow.pop %v1447
    %v1449 = vadd.f32 %v1448, 1.0
    %v1450 = vrcp.pop %v1449
    %v1451 = vmul.f32 1.0, %v1450
    %v1453 = vrot.slane %v1238, 1
    %v1455 = vadd.f32 %v1453, %v1373
    %v1456 = vxor.u32 %v1455, 2147483648
    %v1457 = vmul.f32 %v1456, 1.442695
    %v1458 = vpow.pop %v1457
    %v1459 = vadd.f32 %v1458, 1.0
    %v1460 = vrcp.pop %v1459
    %v1461 = vmul.f32 1.0, %v1460
    %v1462 = vmul.f32 %v1451, %v1442
    %v1463 = vrot.slane %v1238, 2
    %v1465 = vadd.f32 %v1463, %v1462
    %v1466 = vtanh.pop %v1465
    %v1467 = vsub.f32 1.0, %v1461
    %v1468 = vmul.f32 %v1467, %v1466
    %v1469 = vmul.f32 %v1461, %v1235
    %v1470 = vadd.f32 %v1468, %v1469
    %1471 = vst [vmem:[#allocation3 + $0x4] sm:$0x1] %v1470
    %s1472 = scalar_lea.vmem [#allocation2], 5
    %v1473 = vld [vmem:[%s1472] ss:$8 sm:$0x7]
    %v1474 = vld [vmem:[#allocation9] sm:$0xff]
    %v1475 = vld [vmem:[#allocation9 + $0x8] sm:$0xff]
    %v1476 = vld [vmem:[#allocation9 + $0x10] sm:$0xff]
    %v1477 = vld [vmem:[#allocation9 + $0x18] sm:$0xff]
    %v1478 = vld [vmem:[#allocation9 + $0x20] sm:$0xff]
    %v1479 = vld [vmem:[#allocation9 + $0x28] sm:$0xff]
    %v1480 = vld [vmem:[#allocation9 + $0x30] sm:$0xff]
    %v1481 = vld [vmem:[#allocation9 + $0x38] sm:$0xff]
    %v1482 = vld [vmem:[#allocation9 + $0x40] sm:$0xff]
    %v1483 = vld [vmem:[#allocation9 + $0x48] sm:$0xff]
    %v1484 = vld [vmem:[#allocation9 + $0x50] sm:$0xff]
    %v1485 = vld [vmem:[#allocation9 + $0x58] sm:$0xff]
    %v1486 = vld [vmem:[#allocation9 + $0x60] sm:$0xff]
    %v1487 = vld [vmem:[#allocation9 + $0x68] sm:$0xff]
    %v1488 = vld [vmem:[#allocation9 + $0x70] sm:$0xff]
    %v1489 = vld [vmem:[#allocation9 + $0x78] sm:$0xff]
    %v1490 = vld [vmem:[#allocation9 + $0x80] sm:$0xff]
    %v1491 = vld [vmem:[#allocation9 + $0x88] sm:$0xff]
    %v1492 = vld [vmem:[#allocation9 + $0x90] sm:$0xff]
    %v1493 = vld [vmem:[#allocation9 + $0x98] sm:$0xff]
    %v1494 = vld [vmem:[#allocation9 + $0xa0] sm:$0xff]
    %v1495 = vld [vmem:[#allocation9 + $0xa8] sm:$0xff]
    %v1496 = vld [vmem:[#allocation9 + $0xb0] sm:$0xff]
    %v1497 = vld [vmem:[#allocation9 + $0xb8] sm:$0xff]
    %v1498 = vld [vmem:[#allocation9 + $0xc0] sm:$0xff]
    %v1499 = vld [vmem:[#allocation9 + $0xc8] sm:$0xff]
    %v1500 = vld [vmem:[#allocation9 + $0xd0] sm:$0xff]
    %v1501 = vld [vmem:[#allocation9 + $0xd8] sm:$0xff]
    %v1502 = vld [vmem:[#allocation9 + $0xe0] sm:$0xff]
    %v1503 = vld [vmem:[#allocation9 + $0xe8] sm:$0xff]
    %v1504 = vld [vmem:[#allocation9 + $0xf0] sm:$0xff]
    %v1505 = vld [vmem:[#allocation9 + $0xf8] sm:$0xff]
    %v1506 = vld [vmem:[#allocation9 + $0x100] sm:$0xff]
    %v1507 = vld [vmem:[#allocation9 + $0x108] sm:$0xff]
    %v1508 = vld [vmem:[#allocation9 + $0x110] sm:$0xff]
    %v1509 = vld [vmem:[#allocation9 + $0x118] sm:$0xff]
    %v1510 = vld [vmem:[#allocation9 + $0x120] sm:$0xff]
    %v1511 = vld [vmem:[#allocation9 + $0x128] sm:$0xff]
    %v1512 = vld [vmem:[#allocation9 + $0x130] sm:$0xff]
    %v1513 = vld [vmem:[#allocation9 + $0x138] sm:$0xff]
    %v1514 = vld [vmem:[#allocation9 + $0x140] sm:$0xff]
    %v1515 = vld [vmem:[#allocation9 + $0x148] sm:$0xff]
    %v1516 = vld [vmem:[#allocation9 + $0x150] sm:$0xff]
    %v1517 = vld [vmem:[#allocation9 + $0x158] sm:$0xff]
    %v1518 = vld [vmem:[#allocation9 + $0x160] sm:$0xff]
    %v1519 = vld [vmem:[#allocation9 + $0x168] sm:$0xff]
    %v1520 = vld [vmem:[#allocation9 + $0x170] sm:$0xff]
    %v1521 = vld [vmem:[#allocation9 + $0x178] sm:$0xff]
    %v1522 = vld [vmem:[%s5] sm:$0x7]
    %v1524 = vlaneseq
    %v1525 = vshrl.u32 %v1524, 7
    %v1526 = vsub.s32 0, %v1525
    %v1527 = vrot.slane %v1522, %v1526
    %v1528 = vlaneseq
    %v1529 = vshrl.u32 %v1528, 7
    %v1530 = vsub.s32 1, %v1529
    %v1531 = vrot.slane %v1522, %v1530
    %v1532 = vlaneseq
    %v1533 = vshrl.u32 %v1532, 7
    %v1534 = vsub.s32 2, %v1533
    %v1535 = vrot.slane %v1522, %v1534
    %1539 = vmatprep.subr.mxu0 %v1475
    %1540 = vmatpush1.msra.mxu0 %v1474
    %1541 = vmatprep.subr.mxu0 %v1478
    %1542 = vmatpush1.msra.mxu0 %v1477
    %1543 = vmatprep.subr.mxu0 %v1481
    %1544 = vmatpush1.msra.mxu0 %v1480
    %1545 = vmatprep.subr.mxu0 %v1484
    %1546 = vmatpush1.msra.mxu0 %v1483
    %1547 = vmatprep.subr.mxu0 %v1487
    %1548 = vmatpush1.msra.mxu0 %v1486
    %1549 = vmatprep.subr.mxu0 %v1490
    %1550 = vmatpush1.msra.mxu0 %v1489
    %1551 = vmatprep.subr.mxu0 %v1493
    %1552 = vmatpush1.msra.mxu0 %v1492
    %1553 = vmatprep.subr.mxu0 %v1496
    %1554 = vmatpush1.msra.mxu0 %v1495
    %1555 = vmatprep.subr.mxu0 %v1499
    %1556 = vmatpush1.msra.mxu0 %v1498
    %1557 = vmatprep.subr.mxu0 %v1502
    %1558 = vmatpush1.msra.mxu0 %v1501
    %1559 = vmatprep.subr.mxu0 %v1505
    %1560 = vmatpush1.msra.mxu0 %v1504
    %1561 = vmatprep.subr.mxu0 %v1508
    %1562 = vmatpush1.msra.mxu0 %v1507
    %1563 = vmatprep.subr.mxu0 %v1511
    %1564 = vmatpush1.msra.mxu0 %v1510
    %1565 = vmatprep.subr.mxu0 %v1514
    %1566 = vmatpush1.msra.mxu0 %v1513
    %1567 = vmatprep.subr.mxu0 %v1517
    %1568 = vmatpush1.msra.mxu0 %v1516
    %1569 = vmatprep.subr.mxu0 %v1520
    %1570 = vmatpush1.msra.mxu0 %v1519
    %1571 = vmatprep.subr.mxu0 0.0
    %1572 = vmatpush1.msra.mxu0 0.0
    %1573 = vmatprep.subr.mxu0 0.0
    %1574 = vmatpush1.msra.mxu0 0.0
    %1575 = vmatprep.subr.mxu0 0.0
    %1576 = vmatpush1.msra.mxu0 0.0
    %1577 = vmatprep.subr.mxu0 0.0
    %1578 = vmatpush1.msra.mxu0 0.0
    %1579 = vmatprep.subr.mxu0 0.0
    %1580 = vmatpush1.msra.mxu0 0.0
    %1581 = vmatprep.subr.mxu0 0.0
    %1582 = vmatpush1.msra.mxu0 0.0
    %1583 = vmatprep.subr.mxu0 0.0
    %1584 = vmatpush1.msra.mxu0 0.0
    %1585 = vmatprep.subr.mxu0 0.0
    %1586 = vmatpush1.msra.mxu0 0.0
    %1587 = vmatprep.subr.mxu0 0.0
    %1588 = vmatpush1.msra.mxu0 0.0
    %1589 = vmatprep.subr.mxu0 0.0
    %1590 = vmatpush1.msra.mxu0 0.0
    %1591 = vmatprep.subr.mxu0 0.0
    %1592 = vmatpush1.msra.mxu0 0.0
    %1593 = vmatprep.subr.mxu0 0.0
    %1594 = vmatpush1.msra.mxu0 0.0
    %1595 = vmatprep.subr.mxu0 0.0
    %1596 = vmatpush1.msra.mxu0 0.0
    %1597 = vmatprep.subr.mxu0 0.0
    %1598 = vmatpush1.msra.mxu0 0.0
    %1599 = vmatprep.subr.mxu0 0.0
    %1600 = vmatpush1.msra.mxu0 0.0
    %1601 = vmatprep.subr.mxu0 0.0
    %1602 = vmatpush1.msra.mxu0 0.0
    %1603 = vmatprep.mubr.f32.mxu0 0.0
    %1604 = vmatmul.mubr.f32.gmra.mrb[0].mxu0 %v1470
    %v1605 = vpop.f32.mrb[0].mxu0
    %v1606 = vadd.f32 %v1527, %v1605
    %v1607 = vpop.f32.mrb[0].mxu0
    %v1608 = vadd.f32 %v1531, %v1607
    %1609 = vdwg.mxu0
    %1610 = vmatprep.subr.mxu0 0.0
    %1611 = vmatpush1.msra.mxu0 %v1476
    %1612 = vmatprep.subr.mxu0 0.0
    %1613 = vmatpush1.msra.mxu0 %v1479
    %1614 = vmatprep.subr.mxu0 0.0
    %1615 = vmatpush1.msra.mxu0 %v1482
    %1616 = vmatprep.subr.mxu0 0.0
    %1617 = vmatpush1.msra.mxu0 %v1485
    %1618 = vmatprep.subr.mxu0 0.0
    %1619 = vmatpush1.msra.mxu0 %v1488
    %1620 = vmatprep.subr.mxu0 0.0
    %1621 = vmatpush1.msra.mxu0 %v1491
    %1622 = vmatprep.subr.mxu0 0.0
    %1623 = vmatpush1.msra.mxu0 %v1494
    %1624 = vmatprep.subr.mxu0 0.0
    %1625 = vmatpush1.msra.mxu0 %v1497
    %1626 = vmatprep.subr.mxu0 0.0
    %1627 = vmatpush1.msra.mxu0 %v1500
    %1628 = vmatprep.subr.mxu0 0.0
    %1629 = vmatpush1.msra.mxu0 %v1503
    %1630 = vmatprep.subr.mxu0 0.0
    %1631 = vmatpush1.msra.mxu0 %v1506
    %1632 = vmatprep.subr.mxu0 0.0
    %1633 = vmatpush1.msra.mxu0 %v1509
    %1634 = vmatprep.subr.mxu0 0.0
    %1635 = vmatpush1.msra.mxu0 %v1512
    %1636 = vmatprep.subr.mxu0 0.0
    %1637 = vmatpush1.msra.mxu0 %v1515
    %1638 = vmatprep.subr.mxu0 0.0
    %1639 = vmatpush1.msra.mxu0 %v1518
    %1640 = vmatprep.subr.mxu0 0.0
    %1641 = vmatpush1.msra.mxu0 %v1521
    %1642 = vmatprep.subr.mxu0 0.0
    %1643 = vmatpush1.msra.mxu0 0.0
    %1644 = vmatprep.subr.mxu0 0.0
    %1645 = vmatpush1.msra.mxu0 0.0
    %1646 = vmatprep.subr.mxu0 0.0
    %1647 = vmatpush1.msra.mxu0 0.0
    %1648 = vmatprep.subr.mxu0 0.0
    %1649 = vmatpush1.msra.mxu0 0.0
    %1650 = vmatprep.subr.mxu0 0.0
    %1651 = vmatpush1.msra.mxu0 0.0
    %1652 = vmatprep.subr.mxu0 0.0
    %1653 = vmatpush1.msra.mxu0 0.0
    %1654 = vmatprep.subr.mxu0 0.0
    %1655 = vmatpush1.msra.mxu0 0.0
    %1656 = vmatprep.subr.mxu0 0.0
    %1657 = vmatpush1.msra.mxu0 0.0
    %1658 = vmatprep.subr.mxu0 0.0
    %1659 = vmatpush1.msra.mxu0 0.0
    %1660 = vmatprep.subr.mxu0 0.0
    %1661 = vmatpush1.msra.mxu0 0.0
    %1662 = vmatprep.subr.mxu0 0.0
    %1663 = vmatpush1.msra.mxu0 0.0
    %1664 = vmatprep.subr.mxu0 0.0
    %1665 = vmatpush1.msra.mxu0 0.0
    %1666 = vmatprep.subr.mxu0 0.0
    %1667 = vmatpush1.msra.mxu0 0.0
    %1668 = vmatprep.subr.mxu0 0.0
    %1669 = vmatpush1.msra.mxu0 0.0
    %1670 = vmatprep.subr.mxu0 0.0
    %1671 = vmatpush1.msra.mxu0 0.0
    %1672 = vmatprep.subr.mxu0 0.0
    %1673 = vmatpush1.msra.mxu0 0.0
    %1674 = vmatprep.mubr.f32.mxu0 0.0
    %1675 = vmatmul.mubr.f32.gmra.mrb[0].mxu0 %v1470
    %v1676 = vpop.f32.mrb[0].mxu0
    %v1677 = vadd.f32 %v1535, %v1676
    %v1678 = vpop.f32.mrb[0].mxu0
    %1679 = vdwg.mxu0
    %v1680 = vadd.f32 %v1473, %v1606
    %v1681 = vxor.u32 %v1680, 2147483648
    %v1682 = vmul.f32 %v1681, 1.442695
    %v1683 = vpow.pop %v1682
    %v1684 = vadd.f32 %v1683, 1.0
    %v1685 = vrcp.pop %v1684
    %v1686 = vmul.f32 1.0, %v1685
    %v1688 = vrot.slane %v1473, 1
    %v1690 = vadd.f32 %v1688, %v1608
    %v1691 = vxor.u32 %v1690, 2147483648
    %v1692 = vmul.f32 %v1691, 1.442695
    %v1693 = vpow.pop %v1692
    %v1694 = vadd.f32 %v1693, 1.0
    %v1695 = vrcp.pop %v1694
    %v1696 = vmul.f32 1.0, %v1695
    %v1697 = vmul.f32 %v1686, %v1677
    %v1698 = vrot.slane %v1473, 2
    %v1700 = vadd.f32 %v1698, %v1697
    %v1701 = vtanh.pop %v1700
    %v1702 = vsub.f32 1.0, %v1696
    %v1703 = vmul.f32 %v1702, %v1701
    %v1704 = vmul.f32 %v1696, %v1470
    %v1705 = vadd.f32 %v1703, %v1704
    %1706 = vst [vmem:[#allocation3 + $0x5] sm:$0x1] %v1705
    %s1707 = scalar_lea.vmem [#allocation2], 6
    %v1708 = vld [vmem:[%s1707] ss:$8 sm:$0x7]
    %v1709 = vld [vmem:[#allocation9] sm:$0xff]
    %v1710 = vld [vmem:[#allocation9 + $0x8] sm:$0xff]
    %v1711 = vld [vmem:[#allocation9 + $0x10] sm:$0xff]
    %v1712 = vld [vmem:[#allocation9 + $0x18] sm:$0xff]
    %v1713 = vld [vmem:[#allocation9 + $0x20] sm:$0xff]
    %v1714 = vld [vmem:[#allocation9 + $0x28] sm:$0xff]
    %v1715 = vld [vmem:[#allocation9 + $0x30] sm:$0xff]
    %v1716 = vld [vmem:[#allocation9 + $0x38] sm:$0xff]
    %v1717 = vld [vmem:[#allocation9 + $0x40] sm:$0xff]
    %v1718 = vld [vmem:[#allocation9 + $0x48] sm:$0xff]
    %v1719 = vld [vmem:[#allocation9 + $0x50] sm:$0xff]
    %v1720 = vld [vmem:[#allocation9 + $0x58] sm:$0xff]
    %v1721 = vld [vmem:[#allocation9 + $0x60] sm:$0xff]
    %v1722 = vld [vmem:[#allocation9 + $0x68] sm:$0xff]
    %v1723 = vld [vmem:[#allocation9 + $0x70] sm:$0xff]
    %v1724 = vld [vmem:[#allocation9 + $0x78] sm:$0xff]
    %v1725 = vld [vmem:[#allocation9 + $0x80] sm:$0xff]
    %v1726 = vld [vmem:[#allocation9 + $0x88] sm:$0xff]
    %v1727 = vld [vmem:[#allocation9 + $0x90] sm:$0xff]
    %v1728 = vld [vmem:[#allocation9 + $0x98] sm:$0xff]
    %v1729 = vld [vmem:[#allocation9 + $0xa0] sm:$0xff]
    %v1730 = vld [vmem:[#allocation9 + $0xa8] sm:$0xff]
    %v1731 = vld [vmem:[#allocation9 + $0xb0] sm:$0xff]
    %v1732 = vld [vmem:[#allocation9 + $0xb8] sm:$0xff]
    %v1733 = vld [vmem:[#allocation9 + $0xc0] sm:$0xff]
    %v1734 = vld [vmem:[#allocation9 + $0xc8] sm:$0xff]
    %v1735 = vld [vmem:[#allocation9 + $0xd0] sm:$0xff]
    %v1736 = vld [vmem:[#allocation9 + $0xd8] sm:$0xff]
    %v1737 = vld [vmem:[#allocation9 + $0xe0] sm:$0xff]
    %v1738 = vld [vmem:[#allocation9 + $0xe8] sm:$0xff]
    %v1739 = vld [vmem:[#allocation9 + $0xf0] sm:$0xff]
    %v1740 = vld [vmem:[#allocation9 + $0xf8] sm:$0xff]
    %v1741 = vld [vmem:[#allocation9 + $0x100] sm:$0xff]
    %v1742 = vld [vmem:[#allocation9 + $0x108] sm:$0xff]
    %v1743 = vld [vmem:[#allocation9 + $0x110] sm:$0xff]
    %v1744 = vld [vmem:[#allocation9 + $0x118] sm:$0xff]
    %v1745 = vld [vmem:[#allocation9 + $0x120] sm:$0xff]
    %v1746 = vld [vmem:[#allocation9 + $0x128] sm:$0xff]
    %v1747 = vld [vmem:[#allocation9 + $0x130] sm:$0xff]
    %v1748 = vld [vmem:[#allocation9 + $0x138] sm:$0xff]
    %v1749 = vld [vmem:[#allocation9 + $0x140] sm:$0xff]
    %v1750 = vld [vmem:[#allocation9 + $0x148] sm:$0xff]
    %v1751 = vld [vmem:[#allocation9 + $0x150] sm:$0xff]
    %v1752 = vld [vmem:[#allocation9 + $0x158] sm:$0xff]
    %v1753 = vld [vmem:[#allocation9 + $0x160] sm:$0xff]
    %v1754 = vld [vmem:[#allocation9 + $0x168] sm:$0xff]
    %v1755 = vld [vmem:[#allocation9 + $0x170] sm:$0xff]
    %v1756 = vld [vmem:[#allocation9 + $0x178] sm:$0xff]
    %v1757 = vld [vmem:[%s5] sm:$0x7]
    %v1759 = vlaneseq
    %v1760 = vshrl.u32 %v1759, 7
    %v1761 = vsub.s32 0, %v1760
    %v1762 = vrot.slane %v1757, %v1761
    %v1763 = vlaneseq
    %v1764 = vshrl.u32 %v1763, 7
    %v1765 = vsub.s32 1, %v1764
    %v1766 = vrot.slane %v1757, %v1765
    %v1767 = vlaneseq
    %v1768 = vshrl.u32 %v1767, 7
    %v1769 = vsub.s32 2, %v1768
    %v1770 = vrot.slane %v1757, %v1769
    %1774 = vmatprep.subr.mxu0 %v1710
    %1775 = vmatpush1.msra.mxu0 %v1709
    %1776 = vmatprep.subr.mxu0 %v1713
    %1777 = vmatpush1.msra.mxu0 %v1712
    %1778 = vmatprep.subr.mxu0 %v1716
    %1779 = vmatpush1.msra.mxu0 %v1715
    %1780 = vmatprep.subr.mxu0 %v1719
    %1781 = vmatpush1.msra.mxu0 %v1718
    %1782 = vmatprep.subr.mxu0 %v1722
    %1783 = vmatpush1.msra.mxu0 %v1721
    %1784 = vmatprep.subr.mxu0 %v1725
    %1785 = vmatpush1.msra.mxu0 %v1724
    %1786 = vmatprep.subr.mxu0 %v1728
    %1787 = vmatpush1.msra.mxu0 %v1727
    %1788 = vmatprep.subr.mxu0 %v1731
    %1789 = vmatpush1.msra.mxu0 %v1730
    %1790 = vmatprep.subr.mxu0 %v1734
    %1791 = vmatpush1.msra.mxu0 %v1733
    %1792 = vmatprep.subr.mxu0 %v1737
    %1793 = vmatpush1.msra.mxu0 %v1736
    %1794 = vmatprep.subr.mxu0 %v1740
    %1795 = vmatpush1.msra.mxu0 %v1739
    %1796 = vmatprep.subr.mxu0 %v1743
    %1797 = vmatpush1.msra.mxu0 %v1742
    %1798 = vmatprep.subr.mxu0 %v1746
    %1799 = vmatpush1.msra.mxu0 %v1745
    %1800 = vmatprep.subr.mxu0 %v1749
    %1801 = vmatpush1.msra.mxu0 %v1748
    %1802 = vmatprep.subr.mxu0 %v1752
    %1803 = vmatpush1.msra.mxu0 %v1751
    %1804 = vmatprep.subr.mxu0 %v1755
    %1805 = vmatpush1.msra.mxu0 %v1754
    %1806 = vmatprep.subr.mxu0 0.0
    %1807 = vmatpush1.msra.mxu0 0.0
    %1808 = vmatprep.subr.mxu0 0.0
    %1809 = vmatpush1.msra.mxu0 0.0
    %1810 = vmatprep.subr.mxu0 0.0
    %1811 = vmatpush1.msra.mxu0 0.0
    %1812 = vmatprep.subr.mxu0 0.0
    %1813 = vmatpush1.msra.mxu0 0.0
    %1814 = vmatprep.subr.mxu0 0.0
    %1815 = vmatpush1.msra.mxu0 0.0
    %1816 = vmatprep.subr.mxu0 0.0
    %1817 = vmatpush1.msra.mxu0 0.0
    %1818 = vmatprep.subr.mxu0 0.0
    %1819 = vmatpush1.msra.mxu0 0.0
    %1820 = vmatprep.subr.mxu0 0.0
    %1821 = vmatpush1.msra.mxu0 0.0
    %1822 = vmatprep.subr.mxu0 0.0
    %1823 = vmatpush1.msra.mxu0 0.0
    %1824 = vmatprep.subr.mxu0 0.0
    %1825 = vmatpush1.msra.mxu0 0.0
    %1826 = vmatprep.subr.mxu0 0.0
    %1827 = vmatpush1.msra.mxu0 0.0
    %1828 = vmatprep.subr.mxu0 0.0
    %1829 = vmatpush1.msra.mxu0 0.0
    %1830 = vmatprep.subr.mxu0 0.0
    %1831 = vmatpush1.msra.mxu0 0.0
    %1832 = vmatprep.subr.mxu0 0.0
    %1833 = vmatpush1.msra.mxu0 0.0
    %1834 = vmatprep.subr.mxu0 0.0
    %1835 = vmatpush1.msra.mxu0 0.0
    %1836 = vmatprep.subr.mxu0 0.0
    %1837 = vmatpush1.msra.mxu0 0.0
    %1838 = vmatprep.mubr.f32.mxu0 0.0
    %1839 = vmatmul.mubr.f32.gmra.mrb[0].mxu0 %v1705
    %v1840 = vpop.f32.mrb[0].mxu0
    %v1841 = vadd.f32 %v1762, %v1840
    %v1842 = vpop.f32.mrb[0].mxu0
    %v1843 = vadd.f32 %v1766, %v1842
    %1844 = vdwg.mxu0
    %1845 = vmatprep.subr.mxu0 0.0
    %1846 = vmatpush1.msra.mxu0 %v1711
    %1847 = vmatprep.subr.mxu0 0.0
    %1848 = vmatpush1.msra.mxu0 %v1714
    %1849 = vmatprep.subr.mxu0 0.0
    %1850 = vmatpush1.msra.mxu0 %v1717
    %1851 = vmatprep.subr.mxu0 0.0
    %1852 = vmatpush1.msra.mxu0 %v1720
    %1853 = vmatprep.subr.mxu0 0.0
    %1854 = vmatpush1.msra.mxu0 %v1723
    %1855 = vmatprep.subr.mxu0 0.0
    %1856 = vmatpush1.msra.mxu0 %v1726
    %1857 = vmatprep.subr.mxu0 0.0
    %1858 = vmatpush1.msra.mxu0 %v1729
    %1859 = vmatprep.subr.mxu0 0.0
    %1860 = vmatpush1.msra.mxu0 %v1732
    %1861 = vmatprep.subr.mxu0 0.0
    %1862 = vmatpush1.msra.mxu0 %v1735
    %1863 = vmatprep.subr.mxu0 0.0
    %1864 = vmatpush1.msra.mxu0 %v1738
    %1865 = vmatprep.subr.mxu0 0.0
    %1866 = vmatpush1.msra.mxu0 %v1741
    %1867 = vmatprep.subr.mxu0 0.0
    %1868 = vmatpush1.msra.mxu0 %v1744
    %1869 = vmatprep.subr.mxu0 0.0
    %1870 = vmatpush1.msra.mxu0 %v1747
    %1871 = vmatprep.subr.mxu0 0.0
    %1872 = vmatpush1.msra.mxu0 %v1750
    %1873 = vmatprep.subr.mxu0 0.0
    %1874 = vmatpush1.msra.mxu0 %v1753
    %1875 = vmatprep.subr.mxu0 0.0
    %1876 = vmatpush1.msra.mxu0 %v1756
    %1877 = vmatprep.subr.mxu0 0.0
    %1878 = vmatpush1.msra.mxu0 0.0
    %1879 = vmatprep.subr.mxu0 0.0
    %1880 = vmatpush1.msra.mxu0 0.0
    %1881 = vmatprep.subr.mxu0 0.0
    %1882 = vmatpush1.msra.mxu0 0.0
    %1883 = vmatprep.subr.mxu0 0.0
    %1884 = vmatpush1.msra.mxu0 0.0
    %1885 = vmatprep.subr.mxu0 0.0
    %1886 = vmatpush1.msra.mxu0 0.0
    %1887 = vmatprep.subr.mxu0 0.0
    %1888 = vmatpush1.msra.mxu0 0.0
    %1889 = vmatprep.subr.mxu0 0.0
    %1890 = vmatpush1.msra.mxu0 0.0
    %1891 = vmatprep.subr.mxu0 0.0
    %1892 = vmatpush1.msra.mxu0 0.0
    %1893 = vmatprep.subr.mxu0 0.0
    %1894 = vmatpush1.msra.mxu0 0.0
    %1895 = vmatprep.subr.mxu0 0.0
    %1896 = vmatpush1.msra.mxu0 0.0
    %1897 = vmatprep.subr.mxu0 0.0
    %1898 = vmatpush1.msra.mxu0 0.0
    %1899 = vmatprep.subr.mxu0 0.0
    %1900 = vmatpush1.msra.mxu0 0.0
    %1901 = vmatprep.subr.mxu0 0.0
    %1902 = vmatpush1.msra.mxu0 0.0
    %1903 = vmatprep.subr.mxu0 0.0
    %1904 = vmatpush1.msra.mxu0 0.0
    %1905 = vmatprep.subr.mxu0 0.0
    %1906 = vmatpush1.msra.mxu0 0.0
    %1907 = vmatprep.subr.mxu0 0.0
    %1908 = vmatpush1.msra.mxu0 0.0
    %1909 = vmatprep.mubr.f32.mxu0 0.0
    %1910 = vmatmul.mubr.f32.gmra.mrb[0].mxu0 %v1705
    %v1911 = vpop.f32.mrb[0].mxu0
    %v1912 = vadd.f32 %v1770, %v1911
    %v1913 = vpop.f32.mrb[0].mxu0
    %1914 = vdwg.mxu0
    %v1915 = vadd.f32 %v1708, %v1841
    %v1916 = vxor.u32 %v1915, 2147483648
    %v1917 = vmul.f32 %v1916, 1.442695
    %v1918 = vpow.pop %v1917
    %v1919 = vadd.f32 %v1918, 1.0
    %v1920 = vrcp.pop %v1919
    %v1921 = vmul.f32 1.0, %v1920
    %v1923 = vrot.slane %v1708, 1
    %v1925 = vadd.f32 %v1923, %v1843
    %v1926 = vxor.u32 %v1925, 2147483648
    %v1927 = vmul.f32 %v1926, 1.442695
    %v1928 = vpow.pop %v1927
    %v1929 = vadd.f32 %v1928, 1.0
    %v1930 = vrcp.pop %v1929
    %v1931 = vmul.f32 1.0, %v1930
    %v1932 = vmul.f32 %v1921, %v1912
    %v1933 = vrot.slane %v1708, 2
    %v1935 = vadd.f32 %v1933, %v1932
    %v1936 = vtanh.pop %v1935
    %v1937 = vsub.f32 1.0, %v1931
    %v1938 = vmul.f32 %v1937, %v1936
    %v1939 = vmul.f32 %v1931, %v1705
    %v1940 = vadd.f32 %v1938, %v1939
    %1941 = vst [vmem:[#allocation3 + $0x6] sm:$0x1] %v1940
    %s1942 = scalar_lea.vmem [#allocation2], 7
    %v1943 = vld [vmem:[%s1942] ss:$8 sm:$0x7]
    %v1944 = vld [vmem:[#allocation9] sm:$0xff]
    %v1945 = vld [vmem:[#allocation9 + $0x8] sm:$0xff]
    %v1946 = vld [vmem:[#allocation9 + $0x10] sm:$0xff]
    %v1947 = vld [vmem:[#allocation9 + $0x18] sm:$0xff]
    %v1948 = vld [vmem:[#allocation9 + $0x20] sm:$0xff]
    %v1949 = vld [vmem:[#allocation9 + $0x28] sm:$0xff]
    %v1950 = vld [vmem:[#allocation9 + $0x30] sm:$0xff]
    %v1951 = vld [vmem:[#allocation9 + $0x38] sm:$0xff]
    %v1952 = vld [vmem:[#allocation9 + $0x40] sm:$0xff]
    %v1953 = vld [vmem:[#allocation9 + $0x48] sm:$0xff]
    %v1954 = vld [vmem:[#allocation9 + $0x50] sm:$0xff]
    %v1955 = vld [vmem:[#allocation9 + $0x58] sm:$0xff]
    %v1956 = vld [vmem:[#allocation9 + $0x60] sm:$0xff]
    %v1957 = vld [vmem:[#allocation9 + $0x68] sm:$0xff]
    %v1958 = vld [vmem:[#allocation9 + $0x70] sm:$0xff]
    %v1959 = vld [vmem:[#allocation9 + $0x78] sm:$0xff]
    %v1960 = vld [vmem:[#allocation9 + $0x80] sm:$0xff]
    %v1961 = vld [vmem:[#allocation9 + $0x88] sm:$0xff]
    %v1962 = vld [vmem:[#allocation9 + $0x90] sm:$0xff]
    %v1963 = vld [vmem:[#allocation9 + $0x98] sm:$0xff]
    %v1964 = vld [vmem:[#allocation9 + $0xa0] sm:$0xff]
    %v1965 = vld [vmem:[#allocation9 + $0xa8] sm:$0xff]
    %v1966 = vld [vmem:[#allocation9 + $0xb0] sm:$0xff]
    %v1967 = vld [vmem:[#allocation9 + $0xb8] sm:$0xff]
    %v1968 = vld [vmem:[#allocation9 + $0xc0] sm:$0xff]
    %v1969 = vld [vmem:[#allocation9 + $0xc8] sm:$0xff]
    %v1970 = vld [vmem:[#allocation9 + $0xd0] sm:$0xff]
    %v1971 = vld [vmem:[#allocation9 + $0xd8] sm:$0xff]
    %v1972 = vld [vmem:[#allocation9 + $0xe0] sm:$0xff]
    %v1973 = vld [vmem:[#allocation9 + $0xe8] sm:$0xff]
    %v1974 = vld [vmem:[#allocation9 + $0xf0] sm:$0xff]
    %v1975 = vld [vmem:[#allocation9 + $0xf8] sm:$0xff]
    %v1976 = vld [vmem:[#allocation9 + $0x100] sm:$0xff]
    %v1977 = vld [vmem:[#allocation9 + $0x108] sm:$0xff]
    %v1978 = vld [vmem:[#allocation9 + $0x110] sm:$0xff]
    %v1979 = vld [vmem:[#allocation9 + $0x118] sm:$0xff]
    %v1980 = vld [vmem:[#allocation9 + $0x120] sm:$0xff]
    %v1981 = vld [vmem:[#allocation9 + $0x128] sm:$0xff]
    %v1982 = vld [vmem:[#allocation9 + $0x130] sm:$0xff]
    %v1983 = vld [vmem:[#allocation9 + $0x138] sm:$0xff]
    %v1984 = vld [vmem:[#allocation9 + $0x140] sm:$0xff]
    %v1985 = vld [vmem:[#allocation9 + $0x148] sm:$0xff]
    %v1986 = vld [vmem:[#allocation9 + $0x150] sm:$0xff]
    %v1987 = vld [vmem:[#allocation9 + $0x158] sm:$0xff]
    %v1988 = vld [vmem:[#allocation9 + $0x160] sm:$0xff]
    %v1989 = vld [vmem:[#allocation9 + $0x168] sm:$0xff]
    %v1990 = vld [vmem:[#allocation9 + $0x170] sm:$0xff]
    %v1991 = vld [vmem:[#allocation9 + $0x178] sm:$0xff]
    %v1992 = vld [vmem:[%s5] sm:$0x7]
    %v1994 = vlaneseq
    %v1995 = vshrl.u32 %v1994, 7
    %v1996 = vsub.s32 0, %v1995
    %v1997 = vrot.slane %v1992, %v1996
    %v1998 = vlaneseq
    %v1999 = vshrl.u32 %v1998, 7
    %v2000 = vsub.s32 1, %v1999
    %v2001 = vrot.slane %v1992, %v2000
    %v2002 = vlaneseq
    %v2003 = vshrl.u32 %v2002, 7
    %v2004 = vsub.s32 2, %v2003
    %v2005 = vrot.slane %v1992, %v2004
    %2009 = vmatprep.subr.mxu0 %v1945
    %2010 = vmatpush1.msra.mxu0 %v1944
    %2011 = vmatprep.subr.mxu0 %v1948
    %2012 = vmatpush1.msra.mxu0 %v1947
    %2013 = vmatprep.subr.mxu0 %v1951
    %2014 = vmatpush1.msra.mxu0 %v1950
    %2015 = vmatprep.subr.mxu0 %v1954
    %2016 = vmatpush1.msra.mxu0 %v1953
    %2017 = vmatprep.subr.mxu0 %v1957
    %2018 = vmatpush1.msra.mxu0 %v1956
    %2019 = vmatprep.subr.mxu0 %v1960
    %2020 = vmatpush1.msra.mxu0 %v1959
    %2021 = vmatprep.subr.mxu0 %v1963
    %2022 = vmatpush1.msra.mxu0 %v1962
    %2023 = vmatprep.subr.mxu0 %v1966
    %2024 = vmatpush1.msra.mxu0 %v1965
    %2025 = vmatprep.subr.mxu0 %v1969
    %2026 = vmatpush1.msra.mxu0 %v1968
    %2027 = vmatprep.subr.mxu0 %v1972
    %2028 = vmatpush1.msra.mxu0 %v1971
    %2029 = vmatprep.subr.mxu0 %v1975
    %2030 = vmatpush1.msra.mxu0 %v1974
    %2031 = vmatprep.subr.mxu0 %v1978
    %2032 = vmatpush1.msra.mxu0 %v1977
    %2033 = vmatprep.subr.mxu0 %v1981
    %2034 = vmatpush1.msra.mxu0 %v1980
    %2035 = vmatprep.subr.mxu0 %v1984
    %2036 = vmatpush1.msra.mxu0 %v1983
    %2037 = vmatprep.subr.mxu0 %v1987
    %2038 = vmatpush1.msra.mxu0 %v1986
    %2039 = vmatprep.subr.mxu0 %v1990
    %2040 = vmatpush1.msra.mxu0 %v1989
    %2041 = vmatprep.subr.mxu0 0.0
    %2042 = vmatpush1.msra.mxu0 0.0
    %2043 = vmatprep.subr.mxu0 0.0
    %2044 = vmatpush1.msra.mxu0 0.0
    %2045 = vmatprep.subr.mxu0 0.0
    %2046 = vmatpush1.msra.mxu0 0.0
    %2047 = vmatprep.subr.mxu0 0.0
    %2048 = vmatpush1.msra.mxu0 0.0
    %2049 = vmatprep.subr.mxu0 0.0
    %2050 = vmatpush1.msra.mxu0 0.0
    %2051 = vmatprep.subr.mxu0 0.0
    %2052 = vmatpush1.msra.mxu0 0.0
    %2053 = vmatprep.subr.mxu0 0.0
    %2054 = vmatpush1.msra.mxu0 0.0
    %2055 = vmatprep.subr.mxu0 0.0
    %2056 = vmatpush1.msra.mxu0 0.0
    %2057 = vmatprep.subr.mxu0 0.0
    %2058 = vmatpush1.msra.mxu0 0.0
    %2059 = vmatprep.subr.mxu0 0.0
    %2060 = vmatpush1.msra.mxu0 0.0
    %2061 = vmatprep.subr.mxu0 0.0
    %2062 = vmatpush1.msra.mxu0 0.0
    %2063 = vmatprep.subr.mxu0 0.0
    %2064 = vmatpush1.msra.mxu0 0.0
    %2065 = vmatprep.subr.mxu0 0.0
    %2066 = vmatpush1.msra.mxu0 0.0
    %2067 = vmatprep.subr.mxu0 0.0
    %2068 = vmatpush1.msra.mxu0 0.0
    %2069 = vmatprep.subr.mxu0 0.0
    %2070 = vmatpush1.msra.mxu0 0.0
    %2071 = vmatprep.subr.mxu0 0.0
    %2072 = vmatpush1.msra.mxu0 0.0
    %2073 = vmatprep.mubr.f32.mxu0 0.0
    %2074 = vmatmul.mubr.f32.gmra.mrb[0].mxu0 %v1940
    %v2075 = vpop.f32.mrb[0].mxu0
    %v2076 = vadd.f32 %v1997, %v2075
    %v2077 = vpop.f32.mrb[0].mxu0
    %v2078 = vadd.f32 %v2001, %v2077
    %2079 = vdwg.mxu0
    %2080 = vmatprep.subr.mxu0 0.0
    %2081 = vmatpush1.msra.mxu0 %v1946
    %2082 = vmatprep.subr.mxu0 0.0
    %2083 = vmatpush1.msra.mxu0 %v1949
    %2084 = vmatprep.subr.mxu0 0.0
    %2085 = vmatpush1.msra.mxu0 %v1952
    %2086 = vmatprep.subr.mxu0 0.0
    %2087 = vmatpush1.msra.mxu0 %v1955
    %2088 = vmatprep.subr.mxu0 0.0
    %2089 = vmatpush1.msra.mxu0 %v1958
    %2090 = vmatprep.subr.mxu0 0.0
    %2091 = vmatpush1.msra.mxu0 %v1961
    %2092 = vmatprep.subr.mxu0 0.0
    %2093 = vmatpush1.msra.mxu0 %v1964
    %2094 = vmatprep.subr.mxu0 0.0
    %2095 = vmatpush1.msra.mxu0 %v1967
    %2096 = vmatprep.subr.mxu0 0.0
    %2097 = vmatpush1.msra.mxu0 %v1970
    %2098 = vmatprep.subr.mxu0 0.0
    %2099 = vmatpush1.msra.mxu0 %v1973
    %2100 = vmatprep.subr.mxu0 0.0
    %2101 = vmatpush1.msra.mxu0 %v1976
    %2102 = vmatprep.subr.mxu0 0.0
    %2103 = vmatpush1.msra.mxu0 %v1979
    %2104 = vmatprep.subr.mxu0 0.0
    %2105 = vmatpush1.msra.mxu0 %v1982
    %2106 = vmatprep.subr.mxu0 0.0
    %2107 = vmatpush1.msra.mxu0 %v1985
    %2108 = vmatprep.subr.mxu0 0.0
    %2109 = vmatpush1.msra.mxu0 %v1988
    %2110 = vmatprep.subr.mxu0 0.0
    %2111 = vmatpush1.msra.mxu0 %v1991
    %2112 = vmatprep.subr.mxu0 0.0
    %2113 = vmatpush1.msra.mxu0 0.0
    %2114 = vmatprep.subr.mxu0 0.0
    %2115 = vmatpush1.msra.mxu0 0.0
    %2116 = vmatprep.subr.mxu0 0.0
    %2117 = vmatpush1.msra.mxu0 0.0
    %2118 = vmatprep.subr.mxu0 0.0
    %2119 = vmatpush1.msra.mxu0 0.0
    %2120 = vmatprep.subr.mxu0 0.0
    %2121 = vmatpush1.msra.mxu0 0.0
    %2122 = vmatprep.subr.mxu0 0.0
    %2123 = vmatpush1.msra.mxu0 0.0
    %2124 = vmatprep.subr.mxu0 0.0
    %2125 = vmatpush1.msra.mxu0 0.0
    %2126 = vmatprep.subr.mxu0 0.0
    %2127 = vmatpush1.msra.mxu0 0.0
    %2128 = vmatprep.subr.mxu0 0.0
    %2129 = vmatpush1.msra.mxu0 0.0
    %2130 = vmatprep.subr.mxu0 0.0
    %2131 = vmatpush1.msra.mxu0 0.0
    %2132 = vmatprep.subr.mxu0 0.0
    %2133 = vmatpush1.msra.mxu0 0.0
    %2134 = vmatprep.subr.mxu0 0.0
    %2135 = vmatpush1.msra.mxu0 0.0
    %2136 = vmatprep.subr.mxu0 0.0
    %2137 = vmatpush1.msra.mxu0 0.0
    %2138 = vmatprep.subr.mxu0 0.0
    %2139 = vmatpush1.msra.mxu0 0.0
    %2140 = vmatprep.subr.mxu0 0.0
    %2141 = vmatpush1.msra.mxu0 0.0
    %2142 = vmatprep.subr.mxu0 0.0
    %2143 = vmatpush1.msra.mxu0 0.0
    %2144 = vmatprep.mubr.f32.mxu0 0.0
    %2145 = vmatmul.mubr.f32.gmra.mrb[0].mxu0 %v1940
    %v2146 = vpop.f32.mrb[0].mxu0
    %v2147 = vadd.f32 %v2005, %v2146
    %v2148 = vpop.f32.mrb[0].mxu0
    %2149 = vdwg.mxu0
    %v2150 = vadd.f32 %v1943, %v2076
    %v2151 = vxor.u32 %v2150, 2147483648
    %v2152 = vmul.f32 %v2151, 1.442695
    %v2153 = vpow.pop %v2152
    %v2154 = vadd.f32 %v2153, 1.0
    %v2155 = vrcp.pop %v2154
    %v2156 = vmul.f32 1.0, %v2155
    %v2158 = vrot.slane %v1943, 1
    %v2160 = vadd.f32 %v2158, %v2078
    %v2161 = vxor.u32 %v2160, 2147483648
    %v2162 = vmul.f32 %v2161, 1.442695
    %v2163 = vpow.pop %v2162
    %v2164 = vadd.f32 %v2163, 1.0
    %v2165 = vrcp.pop %v2164
    %v2166 = vmul.f32 1.0, %v2165
    %v2167 = vmul.f32 %v2156, %v2147
    %v2168 = vrot.slane %v1943, 2
    %v2170 = vadd.f32 %v2168, %v2167
    %v2171 = vtanh.pop %v2170
    %v2172 = vsub.f32 1.0, %v2166
    %v2173 = vmul.f32 %v2172, %v2171
    %v2174 = vmul.f32 %v2166, %v1940
    %v2175 = vadd.f32 %v2173, %v2174
    %2176 = vst [vmem:[#allocation3 + $0x7] sm:$0x1] %v2175
    %2177 = vst [vmem:[#allocation13] sm:$0x1] %v2175
    %v2178 = vld [vmem:[#allocation3] sm:$0xff]
    %v2179 = vld [vmem:[#allocation10] sm:$0xff]
    %v2180 = vld [vmem:[#allocation10 + $0x8] sm:$0xff]
    %v2181 = vld [vmem:[#allocation10 + $0x10] sm:$0xff]
    %v2182 = vld [vmem:[#allocation10 + $0x18] sm:$0xff]
    %v2183 = vld [vmem:[#allocation10 + $0x20] sm:$0xff]
    %v2184 = vld [vmem:[#allocation10 + $0x28] sm:$0xff]
    %v2185 = vld [vmem:[#allocation10 + $0x30] sm:$0xff]
    %v2186 = vld [vmem:[#allocation10 + $0x38] sm:$0xff]
    %v2187 = vld [vmem:[#allocation10 + $0x40] sm:$0xff]
    %v2188 = vld [vmem:[#allocation10 + $0x48] sm:$0xff]
    %v2189 = vld [vmem:[#allocation10 + $0x50] sm:$0xff]
    %v2190 = vld [vmem:[#allocation10 + $0x58] sm:$0xff]
    %v2191 = vld [vmem:[#allocation10 + $0x60] sm:$0xff]
    %v2192 = vld [vmem:[#allocation10 + $0x68] sm:$0xff]
    %v2193 = vld [vmem:[#allocation10 + $0x70] sm:$0xff]
    %v2194 = vld [vmem:[#allocation10 + $0x78] sm:$0xff]
    %v2195 = vld [vmem:[%s7] sm:$0x1]
    %v2197 = vlaneseq
    %v2198 = vshrl.u32 %v2197, 7
    %v2199 = vsub.s32 0, %v2198
    %v2200 = vrot.slane %v2195, %v2199
    %2202 = vmatprep.subr.mxu0 0.0
    %2203 = vmatpush1.msra.mxu0 %v2179
    %2204 = vmatprep.subr.mxu0 0.0
    %2205 = vmatpush1.msra.mxu0 %v2180
    %2206 = vmatprep.subr.mxu0 0.0
    %2207 = vmatpush1.msra.mxu0 %v2181
    %2208 = vmatprep.subr.mxu0 0.0
    %2209 = vmatpush1.msra.mxu0 %v2182
    %2210 = vmatprep.subr.mxu0 0.0
    %2211 = vmatpush1.msra.mxu0 %v2183
    %2212 = vmatprep.subr.mxu0 0.0
    %2213 = vmatpush1.msra.mxu0 %v2184
    %2214 = vmatprep.subr.mxu0 0.0
    %2215 = vmatpush1.msra.mxu0 %v2185
    %2216 = vmatprep.subr.mxu0 0.0
    %2217 = vmatpush1.msra.mxu0 %v2186
    %2218 = vmatprep.subr.mxu0 0.0
    %2219 = vmatpush1.msra.mxu0 %v2187
    %2220 = vmatprep.subr.mxu0 0.0
    %2221 = vmatpush1.msra.mxu0 %v2188
    %2222 = vmatprep.subr.mxu0 0.0
    %2223 = vmatpush1.msra.mxu0 %v2189
    %2224 = vmatprep.subr.mxu0 0.0
    %2225 = vmatpush1.msra.mxu0 %v2190
    %2226 = vmatprep.subr.mxu0 0.0
    %2227 = vmatpush1.msra.mxu0 %v2191
    %2228 = vmatprep.subr.mxu0 0.0
    %2229 = vmatpush1.msra.mxu0 %v2192
    %2230 = vmatprep.subr.mxu0 0.0
    %2231 = vmatpush1.msra.mxu0 %v2193
    %2232 = vmatprep.subr.mxu0 0.0
    %2233 = vmatpush1.msra.mxu0 %v2194
    %2234 = vmatprep.subr.mxu0 0.0
    %2235 = vmatpush1.msra.mxu0 0.0
    %2236 = vmatprep.subr.mxu0 0.0
    %2237 = vmatpush1.msra.mxu0 0.0
    %2238 = vmatprep.subr.mxu0 0.0
    %2239 = vmatpush1.msra.mxu0 0.0
    %2240 = vmatprep.subr.mxu0 0.0
    %2241 = vmatpush1.msra.mxu0 0.0
    %2242 = vmatprep.subr.mxu0 0.0
    %2243 = vmatpush1.msra.mxu0 0.0
    %2244 = vmatprep.subr.mxu0 0.0
    %2245 = vmatpush1.msra.mxu0 0.0
    %2246 = vmatprep.subr.mxu0 0.0
    %2247 = vmatpush1.msra.mxu0 0.0
    %2248 = vmatprep.subr.mxu0 0.0
    %2249 = vmatpush1.msra.mxu0 0.0
    %2250 = vmatprep.subr.mxu0 0.0
    %2251 = vmatpush1.msra.mxu0 0.0
    %2252 = vmatprep.subr.mxu0 0.0
    %2253 = vmatpush1.msra.mxu0 0.0
    %2254 = vmatprep.subr.mxu0 0.0
    %2255 = vmatpush1.msra.mxu0 0.0
    %2256 = vmatprep.subr.mxu0 0.0
    %2257 = vmatpush1.msra.mxu0 0.0
    %2258 = vmatprep.subr.mxu0 0.0
    %2259 = vmatpush1.msra.mxu0 0.0
    %2260 = vmatprep.subr.mxu0 0.0
    %2261 = vmatpush1.msra.mxu0 0.0
    %2262 = vmatprep.subr.mxu0 0.0
    %2263 = vmatpush1.msra.mxu0 0.0
    %2264 = vmatprep.subr.mxu0 0.0
    %2265 = vmatpush1.msra.mxu0 0.0
    %2266 = vmatprep.mubr.f32.mxu0 0.0
    %2267 = vmatmul.mubr.f32.gmra.mrb[0].mxu0 %v2178
    %v2268 = vpop.f32.mrb[0].mxu0
    %v2269 = vadd.f32 %v2200, %v2268
    %v2270 = vpop.f32.mrb[0].mxu0
    %2271 = vdwg.mxu0
    %2272 = vmax.xlane.f32.xlu0 %v2269
    %v2273 = vpop.xlane.xlu0 %2272
    %v2274 = vsub.f32 %v2269, %v2273
    %v2275 = vmul.f32 %v2274, 1.442695
    %v2276 = vpow.pop %v2275
    %2277 = vadd.xlane.f32.xlu0 %v2276
    %v2278 = vpop.xlane.xlu0 %2277
    %v2279 = vlog2.pop %v2278
    %v2280 = vmul.f32 %v2279, 0.6931472
    %v2281 = vsub.f32 %v2274, %v2280
    %2282 = vst [vmem:[#allocation12] sm:$0xff] %v2281
    // Predicated region
    $region50: #{tpu_custom_call.1} parent=1 // pred_check
      _
    $region51: #{tpu_custom_call.1} parent=1 // pred_check_branch
      %2284 = sbr.rel (0) target = $region53
    $region52: #{tpu_custom_call.1} parent=1 // pred_region
      %s2286 = ssub.s32 128, 128
      %2287 = vsyncadd [#allocation6], %s2286
      %s2289 = sshll.u32 [#allocation12], 4
      %s2290 = int_to_ptr.vmem [resolvable:$true] %s2289
      %2292 = dma.vmem_to_hbm [thread:$0]  %s2290, 128, %s8, [#allocation6]
    $region53: #{tpu_custom_call.1} parent=1 // pred_fallthru
      _
    // Predicated region
    $region54: #{tpu_custom_call.1} parent=1 // pred_check
      _
    $region55: #{tpu_custom_call.1} parent=1 // pred_check_branch
      %2294 = sbr.rel (0) target = $region57
    $region56: #{tpu_custom_call.1} parent=1 // pred_region
      %s2296 = ssub.s32 16, 16
      %2297 = vsyncadd [#allocation14], %s2296
      %s2299 = sshll.u32 [#allocation13], 4
      %s2300 = int_to_ptr.vmem [resolvable:$true] %s2299
      %2302 = dma.vmem_to_hbm [thread:$0]  %s2300, 16, %s9, [#allocation14]
    $region57: #{tpu_custom_call.1} parent=1 // pred_fallthru
      _
    // Predicated region
    $region58: #{tpu_custom_call.1} parent=1 // pred_check
      _
    $region59: #{tpu_custom_call.1} parent=1 // pred_check_branch
      %2304 = sbr.rel (0) target = $region61
    $region60: #{tpu_custom_call.1} parent=1 // pred_region
      %2305 = dma.done [#allocation6], 128
    $region61: #{tpu_custom_call.1} parent=1 // pred_fallthru
      _
    // Predicated region
    $region62: #{tpu_custom_call.1} parent=1 // pred_check
      _
    $region63: #{tpu_custom_call.1} parent=1 // pred_check_branch
      %2307 = sbr.rel (0) target = $region65
    $region64: #{tpu_custom_call.1} parent=1 // pred_region
      %2308 = dma.done [#allocation14], 16
    $region65: #{tpu_custom_call.1} parent=1 // pred_fallthru
      _
    %2309 = vsyncpa [#allocation5], 1
    %2310 = vsyncpa [#allocation8], 1
    %2311 = vsyncpa [#allocation11], 1
    %2312 = vsyncpa [#allocation6], 1
    %2313 = vsyncpa [#allocation14], 1

</llo_original>
